<compile_context>
chip_gen: v7x
topology: tpu7x:2x2x1
jax: 0.10.0
libtpu: 0.0.40
codegen_flags: <defaults>
</compile_context>

<pallas_src>
import jax
import jax.numpy as jnp
from jax.experimental import pallas as pl
from jax.experimental.pallas import tpu as pltpu

BN_EPS = 1e-5
K = 3                                 # conv kernel size
C0, C1, C2, C3 = 64, 256, 128, 64     # channel sizes of the torch module
C3P = 128                             # lane-padded final output channels


def _fused_cnn_kernel(x_ref, w1_ref, w2_ref, w3_ref, p1_ref, p2_ref, p3_ref,
                      out_ref):
    """Whole 3-layer CNN (conv -> relu -> batchnorm, three times), fully in VMEM.

    x_ref  : (N, L, C0)    bf16  input (NLC, no channel padding).
    wX_ref : (K*Cin, Cout) bf16  conv weights, taps stacked along rows.
    pX_ref : (3, Cout)     f32   rows = [bias, gamma, beta] (pad lanes: gamma=0).
    out_ref: (N, L, C3P)   f32   final lane-dense (channel-padded) output.
    """
    n, L, _ = x_ref.shape
    M = n * L

    def pad_len(y):
        # (n, L, c) -> (n, L+2, c) with zero rows at both ends ('same' padding),
        # built in registers (no scratch buffer, no masked interior stores).
        z = jnp.zeros((n, 1, y.shape[-1]), y.dtype)
        return jnp.concatenate([z, y, z], axis=1)

    def conv_relu_bn(xpad, w_ref, p_ref):
        # xpad: (n, L+2, Cin) bf16.  Three shallow bf16 matmuls, f32 accumulation.
        cin = xpad.shape[-1]
        cout = w_ref.shape[-1]
        acc = jnp.zeros((M, cout), jnp.float32)
        for k in range(K):
            tap = xpad[:, k:k + L, :].reshape(M, cin)
            acc = acc + jnp.dot(tap, w_ref[k * cin:(k + 1) * cin, :],
                                preferred_element_type=jnp.float32)
        p = p_ref[...]
        acc = jnp.maximum(acc + p[0:1, :], 0.0)               # bias + ReLU
        # BatchNorm1d (training-mode batch stats over N*L), folded affine.
        mean = jnp.mean(acc, axis=0, keepdims=True)
        var = jnp.mean(acc * acc, axis=0, keepdims=True) - mean * mean
        var = jnp.maximum(var, 0.0)                           # cancellation guard
        s = p[1:2, :] * jax.lax.rsqrt(var + BN_EPS)           # gamma * inv_std
        t = p[2:3, :] - mean * s                              # beta - mean * s
        return acc * s + t                                    # (M, Cout) f32

    xpad = pad_len(x_ref[...])                                      # (n,L+2,C0) bf16
    y1 = conv_relu_bn(xpad, w1_ref, p1_ref)                         # (M, C1) f32
    y1p = pad_len(y1.astype(jnp.bfloat16).reshape(n, L, C1))        # (n,L+2,C1) bf16
    y2 = conv_relu_bn(y1p, w2_ref, p2_ref)                          # (M, C2) f32
    y2p = pad_len(y2.astype(jnp.bfloat16).reshape(n, L, C2))        # (n,L+2,C2) bf16
    y3 = conv_relu_bn(y2p, w3_ref, p3_ref)                          # (M, C3P) f32
    out_ref[...] = y3.reshape(n, L, C3P)


def cnn_pallas(x_ncl, packed_params):
    """x_ncl: (N, 64, L) f32.  packed_params: [(w_flat bf16, pvec f32)] * 3."""
    N, C, L = x_ncl.shape
    # NCL -> NLC and cast to bf16 (the MXU inputs are bf16 anyway) in one fusion.
    x = jnp.transpose(x_ncl, (0, 2, 1)).astype(jnp.bfloat16)

    (w1, p1), (w2, p2), (w3, p3) = packed_params
    vmem = pl.BlockSpec(memory_space=pltpu.MemorySpace.VMEM)

    flops = 2 * N * L * K * (C0 * C1 + C1 * C2 + C2 * C3P)
    bytes_accessed = (x.size * 2
                      + sum(w.size * 2 + p.size * 4 for (w, p) in packed_params)
                      + N * L * C3P * 4)

    out = pl.pallas_call(
        _fused_cnn_kernel,
        out_shape=jax.ShapeDtypeStruct((N, L, C3P), jnp.float32),
        in_specs=[vmem] * 7,
        out_specs=vmem,
        compiler_params=pltpu.CompilerParams(
            vmem_limit_bytes=32 * 1024 * 1024),
        cost_estimate=pl.CostEstimate(flops=flops,
                                      transcendentals=C1 + C2 + C3P,
                                      bytes_accessed=bytes_accessed),
    )(x, w1, w2, w3, p1, p2, p3)

    # Drop padded channels and go NLC -> NCL (single fused slice+transpose).
    return jnp.transpose(out[:, :, :C3], (0, 2, 1))


cnn_forward = jax.jit(cnn_pallas)


def init_params(key):
    """Deterministic synthetic params matching the torch module's shapes."""
    dims = [(C0, C1), (C1, C2), (C2, C3)]
    params = []
    for i, (cin, cout) in enumerate(dims):
        kw, kb = jax.random.split(jax.random.fold_in(key, i))
        # torch Conv1d weight is (Cout, Cin, K); store as (K, Cin, Cout).
        w_oik = jax.random.normal(kw, (cout, cin, K), jnp.float32) * 0.05
        w_kio = jnp.transpose(w_oik, (2, 1, 0))
        b = jax.random.normal(kb, (cout,), jnp.float32) * 0.05
        gamma = jnp.ones((cout,), jnp.float32)   # BatchNorm1d default init
        beta = jnp.zeros((cout,), jnp.float32)
        params.append((w_kio, b, gamma, beta))
    return params


def pack_params(params):
    """Kernel layout: taps stacked into a single (K*Cin, Cout) bf16 matrix,
    Cout lane-padded to >=128 (only layer 3 needs it); [bias, gamma, beta]
    packed into (3, Cout).  INVARIANT: padded lanes keep gamma=0 so the padded
    output channels (and their BN stats) are exactly zero."""
    packed = []
    for (w_kio, b, g, be) in params:
        k, cin, cout = w_kio.shape
        cout_p = max(cout, 128)
        w = jnp.zeros((k, cin, cout_p), jnp.float32)
        w = w.at[:, :, :cout].set(w_kio)
        w_flat = w.reshape(k * cin, cout_p).astype(jnp.bfloat16)
        pvec = jnp.zeros((3, cout_p), jnp.float32)
        pvec = pvec.at[0, :cout].set(b)
        pvec = pvec.at[1, :cout].set(g)
        pvec = pvec.at[2, :cout].set(be)
        packed.append((w_flat, pvec))
    return packed


def cnn_reference(x_ncl, params):
    """Pure-JAX f32 reference (matches torch CNN.forward in train mode)."""
    x = x_ncl
    for (w_kio, b, g, be) in params:
        w_oik = jnp.transpose(w_kio, (2, 1, 0))  # (Cout, Cin, K)
        y = jax.lax.conv_general_dilated(
            x, w_oik, window_strides=(1,), padding="SAME",
            dimension_numbers=("NCH", "OIH", "NCH"))
        y = y + b[None, :, None]
        y = jnp.maximum(y, 0.0)
        mean = jnp.mean(y, axis=(0, 2), keepdims=True)
        var = jnp.mean((y - mean) ** 2, axis=(0, 2), keepdims=True)
        x = (y - mean) * jax.lax.rsqrt(var + BN_EPS) * g[None, :, None] \
            + be[None, :, None]
    return x


if __name__ == "__main__":
    key = jax.random.PRNGKey(0)
    kx, kp = jax.random.split(key)

    N, C, L = 2, 64, 16          # conv1 requires 64 input channels
    x = jax.random.normal(kx, (N, C, L), jnp.float32)
    params = init_params(kp)
    packed = pack_params(params)

    out = cnn_forward(x, packed)
    out = jax.block_until_ready(out)
    assert out.shape == (N, C3, L), out.shape

    ref = cnn_reference(x, params)
    # Kernel uses bf16 MXU matmuls (f32 accumulation); compare loosely
    # element-wise and tightly in aggregate against the f32 reference.
    assert jnp.allclose(out, ref, rtol=1e-1, atol=1e-1), \
        float(jnp.max(jnp.abs(out - ref)))
    rel = jnp.linalg.norm(out - ref) / jnp.linalg.norm(ref)
    assert rel < 3e-2, float(rel)

    print("KERNEL_OK")
</pallas_src>

<mosaic_0001>
module attributes {stable_mosaic.version = 11 : i64} {
  func.func @_fused_cnn_kernel(%arg0: memref<2x16x64xbf16, #tpu.memory_space<vmem>>, %arg1: memref<192x256xbf16, #tpu.memory_space<vmem>>, %arg2: memref<768x128xbf16, #tpu.memory_space<vmem>>, %arg3: memref<384x128xbf16, #tpu.memory_space<vmem>>, %arg4: memref<3x256xf32, #tpu.memory_space<vmem>>, %arg5: memref<3x128xf32, #tpu.memory_space<vmem>>, %arg6: memref<3x128xf32, #tpu.memory_space<vmem>>, %arg7: memref<2x16x128xf32, #tpu.memory_space<vmem>>) attributes {dimension_semantics = [], scalar_prefetch = 0 : i64, scratch_operands = 0 : i64, tpu.core_type = #tpu.core_type<tc>} {
    %c0 = arith.constant 0 : index
    %c0_0 = arith.constant 0 : index
    %c0_1 = arith.constant 0 : index
    %0 = vector.load %arg0[%c0, %c0_0, %c0_1] : memref<2x16x64xbf16, #tpu.memory_space<vmem>>, vector<2x16x64xbf16>
    %cst = arith.constant 0.000000e+00 : bf16
    %1 = vector.broadcast %cst : bf16 to vector<2x1x64xbf16>
    %2 = tpu.concatenate %1, %0, %1 in 1 : vector<2x1x64xbf16>, vector<2x16x64xbf16>, vector<2x1x64xbf16> -> vector<2x18x64xbf16>
    %cst_2 = arith.constant 0.000000e+00 : f32
    %3 = vector.broadcast %cst_2 : f32 to vector<32x256xf32>
    %4 = vector.extract_strided_slice %2 {offsets = [0, 0, 0], sizes = [2, 16, 64], strides = [1, 1, 1]} : vector<2x18x64xbf16> to vector<2x16x64xbf16>
    %5 = vector.shape_cast %4 : vector<2x16x64xbf16> to vector<32x64xbf16>
    %c0_3 = arith.constant 0 : index
    %c0_4 = arith.constant 0 : index
    %6 = vector.load %arg1[%c0_3, %c0_4] : memref<192x256xbf16, #tpu.memory_space<vmem>>, vector<64x256xbf16>
    %cst_5 = arith.constant dense<0.000000e+00> : vector<32x256xf32>
    %7 = tpu.matmul %5, %6, %cst_5 {dimension_numbers = #tpu.dot_dimension_numbers<[1], [0], [0], [1], [0, 0, 1, 1], [], []>} : vector<32x64xbf16>, vector<64x256xbf16>, vector<32x256xf32> -> vector<32x256xf32>
    %8 = arith.addf %3, %7 : vector<32x256xf32>
    %9 = vector.extract_strided_slice %2 {offsets = [0, 1, 0], sizes = [2, 16, 64], strides = [1, 1, 1]} : vector<2x18x64xbf16> to vector<2x16x64xbf16>
    %10 = vector.shape_cast %9 : vector<2x16x64xbf16> to vector<32x64xbf16>
    %c64 = arith.constant 64 : index
    %c0_6 = arith.constant 0 : index
    %11 = vector.load %arg1[%c64, %c0_6] : memref<192x256xbf16, #tpu.memory_space<vmem>>, vector<64x256xbf16>
    %cst_7 = arith.constant dense<0.000000e+00> : vector<32x256xf32>
    %12 = tpu.matmul %10, %11, %cst_7 {dimension_numbers = #tpu.dot_dimension_numbers<[1], [0], [0], [1], [0, 0, 1, 1], [], []>} : vector<32x64xbf16>, vector<64x256xbf16>, vector<32x256xf32> -> vector<32x256xf32>
    %13 = arith.addf %8, %12 : vector<32x256xf32>
    %14 = vector.extract_strided_slice %2 {offsets = [0, 2, 0], sizes = [2, 16, 64], strides = [1, 1, 1]} : vector<2x18x64xbf16> to vector<2x16x64xbf16>
    %15 = vector.shape_cast %14 : vector<2x16x64xbf16> to vector<32x64xbf16>
    %c128 = arith.constant 128 : index
    %c0_8 = arith.constant 0 : index
    %16 = vector.load %arg1[%c128, %c0_8] : memref<192x256xbf16, #tpu.memory_space<vmem>>, vector<64x256xbf16>
    %cst_9 = arith.constant dense<0.000000e+00> : vector<32x256xf32>
    %17 = tpu.matmul %15, %16, %cst_9 {dimension_numbers = #tpu.dot_dimension_numbers<[1], [0], [0], [1], [0, 0, 1, 1], [], []>} : vector<32x64xbf16>, vector<64x256xbf16>, vector<32x256xf32> -> vector<32x256xf32>
    %18 = arith.addf %13, %17 : vector<32x256xf32>
    %c0_10 = arith.constant 0 : index
    %c0_11 = arith.constant 0 : index
    %19 = vector.load %arg4[%c0_10, %c0_11] : memref<3x256xf32, #tpu.memory_space<vmem>>, vector<3x256xf32>
    %20 = vector.extract_strided_slice %19 {offsets = [0, 0], sizes = [1, 256], strides = [1, 1]} : vector<3x256xf32> to vector<1x256xf32>
    %21 = vector.broadcast %20 : vector<1x256xf32> to vector<32x256xf32>
    %22 = arith.addf %18, %21 : vector<32x256xf32>
    %cst_12 = arith.constant 0.000000e+00 : f32
    %23 = vector.broadcast %cst_12 : f32 to vector<32x256xf32>
    %24 = arith.maximumf %22, %23 : vector<32x256xf32>
    %cst_13 = arith.constant dense<0.000000e+00> : vector<256xf32>
    %25 = vector.multi_reduction <add>, %24, %cst_13 [0] : vector<32x256xf32> to vector<256xf32>
    %26 = vector.shape_cast %25 : vector<256xf32> to vector<1x256xf32>
    %cst_14 = arith.constant 3.200000e+01 : f32
    %27 = vector.broadcast %cst_14 : f32 to vector<1x256xf32>
    %28 = arith.divf %26, %27 : vector<1x256xf32>
    %29 = arith.mulf %24, %24 : vector<32x256xf32>
    %cst_15 = arith.constant dense<0.000000e+00> : vector<256xf32>
    %30 = vector.multi_reduction <add>, %29, %cst_15 [0] : vector<32x256xf32> to vector<256xf32>
    %31 = vector.shape_cast %30 : vector<256xf32> to vector<1x256xf32>
    %cst_16 = arith.constant 3.200000e+01 : f32
    %32 = vector.broadcast %cst_16 : f32 to vector<1x256xf32>
    %33 = arith.divf %31, %32 : vector<1x256xf32>
    %34 = arith.mulf %28, %28 : vector<1x256xf32>
    %35 = arith.subf %33, %34 : vector<1x256xf32>
    %cst_17 = arith.constant 0.000000e+00 : f32
    %36 = vector.broadcast %cst_17 : f32 to vector<1x256xf32>
    %37 = arith.maximumf %35, %36 : vector<1x256xf32>
    %38 = vector.extract_strided_slice %19 {offsets = [1, 0], sizes = [1, 256], strides = [1, 1]} : vector<3x256xf32> to vector<1x256xf32>
    %cst_18 = arith.constant 9.99999974E-6 : f32
    %39 = vector.broadcast %cst_18 : f32 to vector<1x256xf32>
    %40 = arith.addf %37, %39 : vector<1x256xf32>
    %41 = math.rsqrt %40 : vector<1x256xf32>
    %42 = arith.mulf %38, %41 : vector<1x256xf32>
    %43 = vector.extract_strided_slice %19 {offsets = [2, 0], sizes = [1, 256], strides = [1, 1]} : vector<3x256xf32> to vector<1x256xf32>
    %44 = arith.mulf %28, %42 : vector<1x256xf32>
    %45 = arith.subf %43, %44 : vector<1x256xf32>
    %46 = vector.broadcast %42 : vector<1x256xf32> to vector<32x256xf32>
    %47 = arith.mulf %24, %46 : vector<32x256xf32>
    %48 = vector.broadcast %45 : vector<1x256xf32> to vector<32x256xf32>
    %49 = arith.addf %47, %48 : vector<32x256xf32>
    %50 = arith.truncf %49 : vector<32x256xf32> to vector<32x256xbf16>
    %51 = vector.shape_cast %50 : vector<32x256xbf16> to vector<2x16x256xbf16>
    %cst_19 = arith.constant 0.000000e+00 : bf16
    %52 = vector.broadcast %cst_19 : bf16 to vector<2x1x256xbf16>
    %53 = tpu.concatenate %52, %51, %52 in 1 : vector<2x1x256xbf16>, vector<2x16x256xbf16>, vector<2x1x256xbf16> -> vector<2x18x256xbf16>
    %cst_20 = arith.constant 0.000000e+00 : f32
    %54 = vector.broadcast %cst_20 : f32 to vector<32x128xf32>
    %55 = vector.extract_strided_slice %53 {offsets = [0, 0, 0], sizes = [2, 16, 256], strides = [1, 1, 1]} : vector<2x18x256xbf16> to vector<2x16x256xbf16>
    %56 = vector.shape_cast %55 : vector<2x16x256xbf16> to vector<32x256xbf16>
    %c0_21 = arith.constant 0 : index
    %c0_22 = arith.constant 0 : index
    %57 = vector.load %arg2[%c0_21, %c0_22] : memref<768x128xbf16, #tpu.memory_space<vmem>>, vector<256x128xbf16>
    %cst_23 = arith.constant dense<0.000000e+00> : vector<32x128xf32>
    %58 = tpu.matmul %56, %57, %cst_23 {dimension_numbers = #tpu.dot_dimension_numbers<[1], [0], [0], [1], [0, 0, 1, 1], [], []>} : vector<32x256xbf16>, vector<256x128xbf16>, vector<32x128xf32> -> vector<32x128xf32>
    %59 = arith.addf %54, %58 : vector<32x128xf32>
    %60 = vector.extract_strided_slice %53 {offsets = [0, 1, 0], sizes = [2, 16, 256], strides = [1, 1, 1]} : vector<2x18x256xbf16> to vector<2x16x256xbf16>
    %61 = vector.shape_cast %60 : vector<2x16x256xbf16> to vector<32x256xbf16>
    %c256 = arith.constant 256 : index
    %c0_24 = arith.constant 0 : index
    %62 = vector.load %arg2[%c256, %c0_24] : memref<768x128xbf16, #tpu.memory_space<vmem>>, vector<256x128xbf16>
    %cst_25 = arith.constant dense<0.000000e+00> : vector<32x128xf32>
    %63 = tpu.matmul %61, %62, %cst_25 {dimension_numbers = #tpu.dot_dimension_numbers<[1], [0], [0], [1], [0, 0, 1, 1], [], []>} : vector<32x256xbf16>, vector<256x128xbf16>, vector<32x128xf32> -> vector<32x128xf32>
    %64 = arith.addf %59, %63 : vector<32x128xf32>
    %65 = vector.extract_strided_slice %53 {offsets = [0, 2, 0], sizes = [2, 16, 256], strides = [1, 1, 1]} : vector<2x18x256xbf16> to vector<2x16x256xbf16>
    %66 = vector.shape_cast %65 : vector<2x16x256xbf16> to vector<32x256xbf16>
    %c512 = arith.constant 512 : index
    %c0_26 = arith.constant 0 : index
    %67 = vector.load %arg2[%c512, %c0_26] : memref<768x128xbf16, #tpu.memory_space<vmem>>, vector<256x128xbf16>
    %cst_27 = arith.constant dense<0.000000e+00> : vector<32x128xf32>
    %68 = tpu.matmul %66, %67, %cst_27 {dimension_numbers = #tpu.dot_dimension_numbers<[1], [0], [0], [1], [0, 0, 1, 1], [], []>} : vector<32x256xbf16>, vector<256x128xbf16>, vector<32x128xf32> -> vector<32x128xf32>
    %69 = arith.addf %64, %68 : vector<32x128xf32>
    %c0_28 = arith.constant 0 : index
    %c0_29 = arith.constant 0 : index
    %70 = vector.load %arg5[%c0_28, %c0_29] : memref<3x128xf32, #tpu.memory_space<vmem>>, vector<3x128xf32>
    %71 = vector.extract_strided_slice %70 {offsets = [0, 0], sizes = [1, 128], strides = [1, 1]} : vector<3x128xf32> to vector<1x128xf32>
    %72 = vector.broadcast %71 : vector<1x128xf32> to vector<32x128xf32>
    %73 = arith.addf %69, %72 : vector<32x128xf32>
    %cst_30 = arith.constant 0.000000e+00 : f32
    %74 = vector.broadcast %cst_30 : f32 to vector<32x128xf32>
    %75 = arith.maximumf %73, %74 : vector<32x128xf32>
    %cst_31 = arith.constant dense<0.000000e+00> : vector<128xf32>
    %76 = vector.multi_reduction <add>, %75, %cst_31 [0] : vector<32x128xf32> to vector<128xf32>
    %77 = vector.shape_cast %76 : vector<128xf32> to vector<1x128xf32>
    %cst_32 = arith.constant 3.200000e+01 : f32
    %78 = vector.broadcast %cst_32 : f32 to vector<1x128xf32>
    %79 = arith.divf %77, %78 : vector<1x128xf32>
    %80 = arith.mulf %75, %75 : vector<32x128xf32>
    %cst_33 = arith.constant dense<0.000000e+00> : vector<128xf32>
    %81 = vector.multi_reduction <add>, %80, %cst_33 [0] : vector<32x128xf32> to vector<128xf32>
    %82 = vector.shape_cast %81 : vector<128xf32> to vector<1x128xf32>
    %cst_34 = arith.constant 3.200000e+01 : f32
    %83 = vector.broadcast %cst_34 : f32 to vector<1x128xf32>
    %84 = arith.divf %82, %83 : vector<1x128xf32>
    %85 = arith.mulf %79, %79 : vector<1x128xf32>
    %86 = arith.subf %84, %85 : vector<1x128xf32>
    %cst_35 = arith.constant 0.000000e+00 : f32
    %87 = vector.broadcast %cst_35 : f32 to vector<1x128xf32>
    %88 = arith.maximumf %86, %87 : vector<1x128xf32>
    %89 = vector.extract_strided_slice %70 {offsets = [1, 0], sizes = [1, 128], strides = [1, 1]} : vector<3x128xf32> to vector<1x128xf32>
    %cst_36 = arith.constant 9.99999974E-6 : f32
    %90 = vector.broadcast %cst_36 : f32 to vector<1x128xf32>
    %91 = arith.addf %88, %90 : vector<1x128xf32>
    %92 = math.rsqrt %91 : vector<1x128xf32>
    %93 = arith.mulf %89, %92 : vector<1x128xf32>
    %94 = vector.extract_strided_slice %70 {offsets = [2, 0], sizes = [1, 128], strides = [1, 1]} : vector<3x128xf32> to vector<1x128xf32>
    %95 = arith.mulf %79, %93 : vector<1x128xf32>
    %96 = arith.subf %94, %95 : vector<1x128xf32>
    %97 = vector.broadcast %93 : vector<1x128xf32> to vector<32x128xf32>
    %98 = arith.mulf %75, %97 : vector<32x128xf32>
    %99 = vector.broadcast %96 : vector<1x128xf32> to vector<32x128xf32>
    %100 = arith.addf %98, %99 : vector<32x128xf32>
    %101 = arith.truncf %100 : vector<32x128xf32> to vector<32x128xbf16>
    %102 = vector.shape_cast %101 : vector<32x128xbf16> to vector<2x16x128xbf16>
    %cst_37 = arith.constant 0.000000e+00 : bf16
    %103 = vector.broadcast %cst_37 : bf16 to vector<2x1x128xbf16>
    %104 = tpu.concatenate %103, %102, %103 in 1 : vector<2x1x128xbf16>, vector<2x16x128xbf16>, vector<2x1x128xbf16> -> vector<2x18x128xbf16>
    %cst_38 = arith.constant 0.000000e+00 : f32
    %105 = vector.broadcast %cst_38 : f32 to vector<32x128xf32>
    %106 = vector.extract_strided_slice %104 {offsets = [0, 0, 0], sizes = [2, 16, 128], strides = [1, 1, 1]} : vector<2x18x128xbf16> to vector<2x16x128xbf16>
    %107 = vector.shape_cast %106 : vector<2x16x128xbf16> to vector<32x128xbf16>
    %c0_39 = arith.constant 0 : index
    %c0_40 = arith.constant 0 : index
    %108 = vector.load %arg3[%c0_39, %c0_40] : memref<384x128xbf16, #tpu.memory_space<vmem>>, vector<128x128xbf16>
    %cst_41 = arith.constant dense<0.000000e+00> : vector<32x128xf32>
    %109 = tpu.matmul %107, %108, %cst_41 {dimension_numbers = #tpu.dot_dimension_numbers<[1], [0], [0], [1], [0, 0, 1, 1], [], []>} : vector<32x128xbf16>, vector<128x128xbf16>, vector<32x128xf32> -> vector<32x128xf32>
    %110 = arith.addf %105, %109 : vector<32x128xf32>
    %111 = vector.extract_strided_slice %104 {offsets = [0, 1, 0], sizes = [2, 16, 128], strides = [1, 1, 1]} : vector<2x18x128xbf16> to vector<2x16x128xbf16>
    %112 = vector.shape_cast %111 : vector<2x16x128xbf16> to vector<32x128xbf16>
    %c128_42 = arith.constant 128 : index
    %c0_43 = arith.constant 0 : index
    %113 = vector.load %arg3[%c128_42, %c0_43] : memref<384x128xbf16, #tpu.memory_space<vmem>>, vector<128x128xbf16>
    %cst_44 = arith.constant dense<0.000000e+00> : vector<32x128xf32>
    %114 = tpu.matmul %112, %113, %cst_44 {dimension_numbers = #tpu.dot_dimension_numbers<[1], [0], [0], [1], [0, 0, 1, 1], [], []>} : vector<32x128xbf16>, vector<128x128xbf16>, vector<32x128xf32> -> vector<32x128xf32>
    %115 = arith.addf %110, %114 : vector<32x128xf32>
    %116 = vector.extract_strided_slice %104 {offsets = [0, 2, 0], sizes = [2, 16, 128], strides = [1, 1, 1]} : vector<2x18x128xbf16> to vector<2x16x128xbf16>
    %117 = vector.shape_cast %116 : vector<2x16x128xbf16> to vector<32x128xbf16>
    %c256_45 = arith.constant 256 : index
    %c0_46 = arith.constant 0 : index
    %118 = vector.load %arg3[%c256_45, %c0_46] : memref<384x128xbf16, #tpu.memory_space<vmem>>, vector<128x128xbf16>
    %cst_47 = arith.constant dense<0.000000e+00> : vector<32x128xf32>
    %119 = tpu.matmul %117, %118, %cst_47 {dimension_numbers = #tpu.dot_dimension_numbers<[1], [0], [0], [1], [0, 0, 1, 1], [], []>} : vector<32x128xbf16>, vector<128x128xbf16>, vector<32x128xf32> -> vector<32x128xf32>
    %120 = arith.addf %115, %119 : vector<32x128xf32>
    %c0_48 = arith.constant 0 : index
    %c0_49 = arith.constant 0 : index
    %121 = vector.load %arg6[%c0_48, %c0_49] : memref<3x128xf32, #tpu.memory_space<vmem>>, vector<3x128xf32>
    %122 = vector.extract_strided_slice %121 {offsets = [0, 0], sizes = [1, 128], strides = [1, 1]} : vector<3x128xf32> to vector<1x128xf32>
    %123 = vector.broadcast %122 : vector<1x128xf32> to vector<32x128xf32>
    %124 = arith.addf %120, %123 : vector<32x128xf32>
    %cst_50 = arith.constant 0.000000e+00 : f32
    %125 = vector.broadcast %cst_50 : f32 to vector<32x128xf32>
    %126 = arith.maximumf %124, %125 : vector<32x128xf32>
    %cst_51 = arith.constant dense<0.000000e+00> : vector<128xf32>
    %127 = vector.multi_reduction <add>, %126, %cst_51 [0] : vector<32x128xf32> to vector<128xf32>
    %128 = vector.shape_cast %127 : vector<128xf32> to vector<1x128xf32>
    %cst_52 = arith.constant 3.200000e+01 : f32
    %129 = vector.broadcast %cst_52 : f32 to vector<1x128xf32>
    %130 = arith.divf %128, %129 : vector<1x128xf32>
    %131 = arith.mulf %126, %126 : vector<32x128xf32>
    %cst_53 = arith.constant dense<0.000000e+00> : vector<128xf32>
    %132 = vector.multi_reduction <add>, %131, %cst_53 [0] : vector<32x128xf32> to vector<128xf32>
    %133 = vector.shape_cast %132 : vector<128xf32> to vector<1x128xf32>
    %cst_54 = arith.constant 3.200000e+01 : f32
    %134 = vector.broadcast %cst_54 : f32 to vector<1x128xf32>
    %135 = arith.divf %133, %134 : vector<1x128xf32>
    %136 = arith.mulf %130, %130 : vector<1x128xf32>
    %137 = arith.subf %135, %136 : vector<1x128xf32>
    %cst_55 = arith.constant 0.000000e+00 : f32
    %138 = vector.broadcast %cst_55 : f32 to vector<1x128xf32>
    %139 = arith.maximumf %137, %138 : vector<1x128xf32>
    %140 = vector.extract_strided_slice %121 {offsets = [1, 0], sizes = [1, 128], strides = [1, 1]} : vector<3x128xf32> to vector<1x128xf32>
    %cst_56 = arith.constant 9.99999974E-6 : f32
    %141 = vector.broadcast %cst_56 : f32 to vector<1x128xf32>
    %142 = arith.addf %139, %141 : vector<1x128xf32>
    %143 = math.rsqrt %142 : vector<1x128xf32>
    %144 = arith.mulf %140, %143 : vector<1x128xf32>
    %145 = vector.extract_strided_slice %121 {offsets = [2, 0], sizes = [1, 128], strides = [1, 1]} : vector<3x128xf32> to vector<1x128xf32>
    %146 = arith.mulf %130, %144 : vector<1x128xf32>
    %147 = arith.subf %145, %146 : vector<1x128xf32>
    %148 = vector.broadcast %144 : vector<1x128xf32> to vector<32x128xf32>
    %149 = arith.mulf %126, %148 : vector<32x128xf32>
    %150 = vector.broadcast %147 : vector<1x128xf32> to vector<32x128xf32>
    %151 = arith.addf %149, %150 : vector<32x128xf32>
    %152 = vector.shape_cast %151 : vector<32x128xf32> to vector<2x16x128xf32>
    %c0_57 = arith.constant 0 : index
    %c0_58 = arith.constant 0 : index
    %c0_59 = arith.constant 0 : index
    %153 = vector.load %arg7[%c0_57, %c0_58, %c0_59] : memref<2x16x128xf32, #tpu.memory_space<vmem>>, vector<2x16x128xf32>
    tpu.vector_store %arg7[%c0_57, %c0_58, %c0_59], %152 {strides = array<i32>} : memref<2x16x128xf32, #tpu.memory_space<vmem>>, vector<2x16x128xf32>,
    return
  }
}

</mosaic_0001>

<llo_original>
// kernel: cnn_pallas.1
$region0: #{cnn_pallas.1}
  #allocation0 [shape = 'u32[]', space=smem, size = 0x4, offset = 0x4, fixed_abs, tag = 'smem constant byte address 0x4 - core index']
  #allocation1 [shape = 'u32[144,128]{1,0:T(1,128)}', space=vmem, size = 0x12000, scoped, tag = 'internal scratch']
  %s0 = inlined_call_operand.vmem [shape: bf16[2,16,64], index: 0, kind: input, shape index: {}]
  %s1 = inlined_call_operand.hbm [shape: bf16[192,256], index: 1, kind: input, shape index: {}]
  %s2 = inlined_call_operand.hbm [shape: bf16[768,128], index: 2, kind: input, shape index: {}]
  %s3 = inlined_call_operand.hbm [shape: bf16[384,128], index: 3, kind: input, shape index: {}]
  %s4 = inlined_call_operand.vmem [shape: f32[3,256], index: 4, kind: input, shape index: {}]
  %s5 = inlined_call_operand.vmem [shape: f32[3,128], index: 5, kind: input, shape index: {}]
  %s6 = inlined_call_operand.vmem [shape: f32[3,128], index: 6, kind: input, shape index: {}]
  %s7 = inlined_call_operand.vmem [shape: f32[2,16,128], index: 7, kind: output, shape index: {}]
  %s8 = sld [smem:[#allocation0]]
  $region50: #{cnn_pallas.1} parent=0
    _
  %s10 = ssub.s32 1, %s8
  %s11 = scalar_select 0, %s10, %s8
  $region1: #{cnn_pallas.1} parent=0
    #allocation2 [shape = 'u8[98304]{0}', space=vmem, size = 0x18000, scoped, tag = 'input window, operand 1, single buffered']
    #allocation3 [shape = 's32[1]{0}', space=sflag, size = 0x4, scoped, tag = 'scoped memory for cnn_pallas.1']
    #allocation4 [shape = 'u8[196608]{0}', space=vmem, size = 0x30000, scoped, tag = 'input window, operand 2, single buffered']
    #allocation5 [shape = 's32[1]{0}', space=sflag, size = 0x4, scoped, tag = 'scoped memory for cnn_pallas.1']
    #allocation6 [shape = 'u8[98304]{0}', space=vmem, size = 0x18000, scoped, tag = 'input window, operand 3, single buffered']
    %12 = vsyncpa [#allocation3], 0
    %13 = vsyncpa [#allocation5], 0
    // Predicated region
    $region2: #{cnn_pallas.1} parent=1 // pred_check
      _
    $region3: #{cnn_pallas.1} parent=1 // pred_check_branch
      %15 = sbr.rel (0) target = $region5
    $region4: #{cnn_pallas.1} parent=1 // pred_region
      _
    $region5: #{cnn_pallas.1} parent=1 // pred_fallthru
      _
    // Predicated region
    $region6: #{cnn_pallas.1} parent=1 // pred_check
      _
    $region7: #{cnn_pallas.1} parent=1 // pred_check_branch
      %17 = sbr.rel (0) target = $region9
    $region8: #{cnn_pallas.1} parent=1 // pred_region
      %s19 = ssub.s32 3072, 3072
      %20 = vsyncadd [#allocation3], %s19
      %s21 = sshll.u32 [#allocation2], 4
      %s22 = int_to_ptr.vmem [resolvable:$true] %s21
      %27 = dma.hbm_to_vmem [thread:$0]  %s1, 3072, %s22, [#allocation3], 128, 128, 8
    $region9: #{cnn_pallas.1} parent=1 // pred_fallthru
      _
    // Predicated region
    $region10: #{cnn_pallas.1} parent=1 // pred_check
      _
    $region11: #{cnn_pallas.1} parent=1 // pred_check_branch
      %29 = sbr.rel (0) target = $region13
    $region12: #{cnn_pallas.1} parent=1 // pred_region
      %s31 = ssub.s32 6144, 6144
      %32 = vsyncadd [#allocation5], %s31
      %s33 = sshll.u32 [#allocation4], 4
      %s34 = int_to_ptr.vmem [resolvable:$true] %s33
      %39 = dma.hbm_to_vmem [thread:$0]  %s2, 6144, %s34, [#allocation5], 64, 64, 4
    $region13: #{cnn_pallas.1} parent=1 // pred_fallthru
      _
    // Predicated region
    $region14: #{cnn_pallas.1} parent=1 // pred_check
      _
    $region15: #{cnn_pallas.1} parent=1 // pred_check_branch
      %41 = sbr.rel (0) target = $region17
    $region16: #{cnn_pallas.1} parent=1 // pred_region
      %s43 = ssub.s32 3072, 3072
      %44 = vsyncadd [#allocation5], %s43
      %s45 = sshll.u32 [#allocation6], 4
      %s46 = int_to_ptr.vmem [resolvable:$true] %s45
      %51 = dma.hbm_to_vmem [thread:$0]  %s3, 3072, %s46, [#allocation5], 64, 64, 4
    $region17: #{cnn_pallas.1} parent=1 // pred_fallthru
      _
    // Predicated region
    $region18: #{cnn_pallas.1} parent=1 // pred_check
      _
    $region19: #{cnn_pallas.1} parent=1 // pred_check_branch
      %53 = sbr.rel (0) target = $region21
    $region20: #{cnn_pallas.1} parent=1 // pred_region
      _
    $region21: #{cnn_pallas.1} parent=1 // pred_fallthru
      _
    // Predicated region
    $region22: #{cnn_pallas.1} parent=1 // pred_check
      _
    $region23: #{cnn_pallas.1} parent=1 // pred_check_branch
      %55 = sbr.rel (0) target = $region25
    $region24: #{cnn_pallas.1} parent=1 // pred_region
      _
    $region25: #{cnn_pallas.1} parent=1 // pred_fallthru
      _
    // Predicated region
    $region26: #{cnn_pallas.1} parent=1 // pred_check
      _
    $region27: #{cnn_pallas.1} parent=1 // pred_check_branch
      %57 = sbr.rel (0) target = $region29
    $region28: #{cnn_pallas.1} parent=1 // pred_region
      _
    $region29: #{cnn_pallas.1} parent=1 // pred_fallthru
      _
    // Predicated region
    $region30: #{cnn_pallas.1} parent=1 // pred_check
      _
    $region31: #{cnn_pallas.1} parent=1 // pred_check_branch
      %59 = sbr.rel (0) target = $region33
    $region32: #{cnn_pallas.1} parent=1 // pred_region
      %60 = dma.done [#allocation3], 3072
    $region33: #{cnn_pallas.1} parent=1 // pred_fallthru
      _
    // Predicated region
    $region34: #{cnn_pallas.1} parent=1 // pred_check
      _
    $region35: #{cnn_pallas.1} parent=1 // pred_check_branch
      %62 = sbr.rel (0) target = $region37
    $region36: #{cnn_pallas.1} parent=1 // pred_region
      %63 = dma.done [#allocation5], 6144
    $region37: #{cnn_pallas.1} parent=1 // pred_fallthru
      _
    // Predicated region
    $region38: #{cnn_pallas.1} parent=1 // pred_check
      _
    $region39: #{cnn_pallas.1} parent=1 // pred_check_branch
      %65 = sbr.rel (0) target = $region41
    $region40: #{cnn_pallas.1} parent=1 // pred_region
      %66 = dma.done [#allocation5], 3072
    $region41: #{cnn_pallas.1} parent=1 // pred_fallthru
      _
    %v68 = vld [vmem:[%s0] sm:$0xf]
    %v69 = vld [vmem:[%s0 + $0x4] sm:$0xf]
    %v70 = vld [vmem:[%s0 + $0x8] sm:$0xf]
    %v71 = vld [vmem:[%s0 + $0xc] sm:$0xf]
    %v76 = vunpack.c.l.b16 %v68
    %v77 = vunpack.c.l.b16 %v69
    %v78 = vunpack.c.l.b16 %v70
    %v79 = vunpack.c.l.b16 %v71
    %v80 = vpack.c.b16 %v77, %v76
    %v81 = vpack.c.b16 %v79, %v78
    %v83 = vshrl.u32 %v80, 16
    %v85 = vrot.slane %v83, 7
    %v86 = vshll.u32 %v80, 16
    %v88 = vor.u32 %v85, %v86
    %v90 = vshrl.u32 %v81, 16
    %v92 = vrot.slane %v90, 7
    %v93 = vshll.u32 %v81, 16
    %v95 = vor.u32 %v92, %v93
    %vm100 = vcmask 1040384
    %vm101 = vsmask.f32 256
    %vm102 = vmand %vm100, %vm101
    %v103 = vsel %vm102, 0, %v88
    %v104 = vsel %vm102, 0, %v95
    %v105 = vsel %vm102, %v85, 0
    %v106 = vsel %vm102, %v92, 0
    %v107 = vld [vmem:[#allocation2] sm:$0xff]
    %v108 = vld [vmem:[#allocation2 + $0x8] sm:$0xff]
    %v109 = vld [vmem:[#allocation2 + $0x10] sm:$0xff]
    %v110 = vld [vmem:[#allocation2 + $0x18] sm:$0xff]
    %v111 = vld [vmem:[#allocation2 + $0x20] sm:$0xff]
    %v112 = vld [vmem:[#allocation2 + $0x28] sm:$0xff]
    %v113 = vld [vmem:[#allocation2 + $0x30] sm:$0xff]
    %v114 = vld [vmem:[#allocation2 + $0x38] sm:$0xff]
    %vm115 = vsmask.f32 7424
    %v117 = vshrl.u32 %v103, 16
    %v119 = vshll.u32 %v103, 16
    %v121 = vrot.slane %v119, 1
    %v122 = vor.u32 %v117, %v121
    %v124 = vshll.u32 %v105, 16
    %v126 = vrot.slane %v124, 1
    %v127 = vsel %vm115, %v122, %v126
    %v129 = vshrl.u32 %v104, 16
    %v131 = vshll.u32 %v104, 16
    %v133 = vrot.slane %v131, 1
    %v134 = vor.u32 %v129, %v133
    %v136 = vshll.u32 %v106, 16
    %v138 = vrot.slane %v136, 1
    %v139 = vsel %vm115, %v134, %v138
    %v140 = vld [vmem:[#allocation2 + $0x40] sm:$0xff]
    %v141 = vld [vmem:[#allocation2 + $0x48] sm:$0xff]
    %v142 = vld [vmem:[#allocation2 + $0x50] sm:$0xff]
    %v143 = vld [vmem:[#allocation2 + $0x58] sm:$0xff]
    %v144 = vld [vmem:[#allocation2 + $0x60] sm:$0xff]
    %v145 = vld [vmem:[#allocation2 + $0x68] sm:$0xff]
    %v146 = vld [vmem:[#allocation2 + $0x70] sm:$0xff]
    %v147 = vld [vmem:[#allocation2 + $0x78] sm:$0xff]
    %v156 = vunpack.c.l.b16 %v140
    %v157 = vunpack.c.h.b16 %v140
    %v158 = vunpack.c.l.b16 %v141
    %v159 = vunpack.c.h.b16 %v141
    %v160 = vunpack.c.l.b16 %v142
    %v161 = vunpack.c.h.b16 %v142
    %v162 = vunpack.c.l.b16 %v143
    %v163 = vunpack.c.h.b16 %v143
    %v164 = vunpack.c.l.b16 %v144
    %v165 = vunpack.c.h.b16 %v144
    %v166 = vunpack.c.l.b16 %v145
    %v167 = vunpack.c.h.b16 %v145
    %v168 = vunpack.c.l.b16 %v146
    %v169 = vunpack.c.h.b16 %v146
    %v170 = vunpack.c.l.b16 %v147
    %v171 = vunpack.c.h.b16 %v147
    %v172 = vpack.c.b16 %v158, %v156
    %v173 = vpack.c.b16 %v159, %v157
    %v174 = vpack.c.b16 %v162, %v160
    %v175 = vpack.c.b16 %v163, %v161
    %v176 = vpack.c.b16 %v166, %v164
    %v177 = vpack.c.b16 %v167, %v165
    %v178 = vpack.c.b16 %v170, %v168
    %v179 = vpack.c.b16 %v171, %v169
    %vm188 = vcmask 523264
    %v190 = vsel %vm188, %v127, 0
    %v193 = vsel %vm188, %v139, 0
    %195 = vmatprep.subr.bf16.mxu0 %v173
    %196 = vmatpush1.bf16.msra.mxu0 %v172
    %197 = vmatprep.subr.bf16.mxu0 %v175
    %198 = vmatpush1.bf16.msra.mxu0 %v174
    %199 = vmatprep.subr.bf16.mxu0 %v177
    %200 = vmatpush1.bf16.msra.mxu0 %v176
    %201 = vmatprep.subr.bf16.mxu0 %v179
    %202 = vmatpush1.bf16.msra.mxu0 %v178
    %203 = vmatprep.subr.bf16.mxu0 0
    %204 = vmatpush1.bf16.msra.mxu0 0
    %205 = vmatprep.subr.bf16.mxu0 0
    %206 = vmatpush1.bf16.msra.mxu0 0
    %207 = vmatprep.subr.bf16.mxu0 0
    %208 = vmatpush1.bf16.msra.mxu0 0
    %209 = vmatprep.subr.bf16.mxu0 0
    %210 = vmatpush1.bf16.msra.mxu0 0
    %211 = vmatprep.subr.bf16.mxu0 0
    %212 = vmatpush1.bf16.msra.mxu0 0
    %213 = vmatprep.subr.bf16.mxu0 0
    %214 = vmatpush1.bf16.msra.mxu0 0
    %215 = vmatprep.subr.bf16.mxu0 0
    %216 = vmatpush1.bf16.msra.mxu0 0
    %217 = vmatprep.subr.bf16.mxu0 0
    %218 = vmatpush1.bf16.msra.mxu0 0
    %219 = vmatprep.subr.bf16.mxu0 0
    %220 = vmatpush1.bf16.msra.mxu0 0
    %221 = vmatprep.subr.bf16.mxu0 0
    %222 = vmatpush1.bf16.msra.mxu0 0
    %223 = vmatprep.subr.bf16.mxu0 0
    %224 = vmatpush1.bf16.msra.mxu0 0
    %225 = vmatprep.subr.bf16.mxu0 0
    %226 = vmatpush1.bf16.msra.mxu0 0
    %227 = vmatprep.mubr.bf16.mxu0 0
    %228 = vmatmul.mubr.bf16.gmra.mrb[0].mxu0 %v190
    %v229 = vpop.f32.mrb[0].mxu0
    %v230 = vadd.f32 0.0, %v229
    %v231 = vpop.f32.mrb[0].mxu0
    %v232 = vadd.f32 0.0, %v231
    %v233 = vpop.f32.mrb[0].mxu0
    %v234 = vadd.f32 0.0, %v233
    %v235 = vpop.f32.mrb[0].mxu0
    %v236 = vadd.f32 0.0, %v235
    %237 = vmatprep.mubr.bf16.mxu0 0
    %238 = vmatmul.mubr.bf16.gmra.mrb[0].mxu0 %v193
    %v239 = vpop.f32.mrb[0].mxu0
    %v240 = vadd.f32 0.0, %v239
    %v241 = vpop.f32.mrb[0].mxu0
    %v242 = vadd.f32 0.0, %v241
    %v243 = vpop.f32.mrb[0].mxu0
    %v244 = vadd.f32 0.0, %v243
    %v245 = vpop.f32.mrb[0].mxu0
    %v246 = vadd.f32 0.0, %v245
    %247 = vdwg.mxu0
    %v256 = vunpack.c.l.b16 %v107
    %v257 = vunpack.c.h.b16 %v107
    %v258 = vunpack.c.l.b16 %v108
    %v259 = vunpack.c.h.b16 %v108
    %v260 = vunpack.c.l.b16 %v109
    %v261 = vunpack.c.h.b16 %v109
    %v262 = vunpack.c.l.b16 %v110
    %v263 = vunpack.c.h.b16 %v110
    %v264 = vunpack.c.l.b16 %v111
    %v265 = vunpack.c.h.b16 %v111
    %v266 = vunpack.c.l.b16 %v112
    %v267 = vunpack.c.h.b16 %v112
    %v268 = vunpack.c.l.b16 %v113
    %v269 = vunpack.c.h.b16 %v113
    %v270 = vunpack.c.l.b16 %v114
    %v271 = vunpack.c.h.b16 %v114
    %v272 = vpack.c.b16 %v258, %v256
    %v273 = vpack.c.b16 %v259, %v257
    %v274 = vpack.c.b16 %v262, %v260
    %v275 = vpack.c.b16 %v263, %v261
    %v276 = vpack.c.b16 %v266, %v264
    %v277 = vpack.c.b16 %v267, %v265
    %v278 = vpack.c.b16 %v270, %v268
    %v279 = vpack.c.b16 %v271, %v269
    %v288 = vsel %vm188, %v103, 0
    %v290 = vsel %vm188, %v104, 0
    %292 = vmatprep.subr.bf16.mxu0 %v273
    %293 = vmatpush1.bf16.msra.mxu0 %v272
    %294 = vmatprep.subr.bf16.mxu0 %v275
    %295 = vmatpush1.bf16.msra.mxu0 %v274
    %296 = vmatprep.subr.bf16.mxu0 %v277
    %297 = vmatpush1.bf16.msra.mxu0 %v276
    %298 = vmatprep.subr.bf16.mxu0 %v279
    %299 = vmatpush1.bf16.msra.mxu0 %v278
    %300 = vmatprep.subr.bf16.mxu0 0
    %301 = vmatpush1.bf16.msra.mxu0 0
    %302 = vmatprep.subr.bf16.mxu0 0
    %303 = vmatpush1.bf16.msra.mxu0 0
    %304 = vmatprep.subr.bf16.mxu0 0
    %305 = vmatpush1.bf16.msra.mxu0 0
    %306 = vmatprep.subr.bf16.mxu0 0
    %307 = vmatpush1.bf16.msra.mxu0 0
    %308 = vmatprep.subr.bf16.mxu0 0
    %309 = vmatpush1.bf16.msra.mxu0 0
    %310 = vmatprep.subr.bf16.mxu0 0
    %311 = vmatpush1.bf16.msra.mxu0 0
    %312 = vmatprep.subr.bf16.mxu0 0
    %313 = vmatpush1.bf16.msra.mxu0 0
    %314 = vmatprep.subr.bf16.mxu0 0
    %315 = vmatpush1.bf16.msra.mxu0 0
    %316 = vmatprep.subr.bf16.mxu0 0
    %317 = vmatpush1.bf16.msra.mxu0 0
    %318 = vmatprep.subr.bf16.mxu0 0
    %319 = vmatpush1.bf16.msra.mxu0 0
    %320 = vmatprep.subr.bf16.mxu0 0
    %321 = vmatpush1.bf16.msra.mxu0 0
    %322 = vmatprep.subr.bf16.mxu0 0
    %323 = vmatpush1.bf16.msra.mxu0 0
    %324 = vmatprep.mubr.bf16.mxu0 0
    %325 = vmatmul.mubr.bf16.gmra.mrb[0].mxu0 %v288
    %v326 = vpop.f32.mrb[0].mxu0
    %v327 = vadd.f32 %v230, %v326
    %v328 = vpop.f32.mrb[0].mxu0
    %v329 = vadd.f32 %v232, %v328
    %v330 = vpop.f32.mrb[0].mxu0
    %v331 = vadd.f32 %v234, %v330
    %v332 = vpop.f32.mrb[0].mxu0
    %v333 = vadd.f32 %v236, %v332
    %334 = vmatprep.mubr.bf16.mxu0 0
    %335 = vmatmul.mubr.bf16.gmra.mrb[0].mxu0 %v290
    %v336 = vpop.f32.mrb[0].mxu0
    %v337 = vadd.f32 %v240, %v336
    %v338 = vpop.f32.mrb[0].mxu0
    %v339 = vadd.f32 %v242, %v338
    %v340 = vpop.f32.mrb[0].mxu0
    %v341 = vadd.f32 %v244, %v340
    %v342 = vpop.f32.mrb[0].mxu0
    %v343 = vadd.f32 %v246, %v342
    %344 = vdwg.mxu0
    %vm349 = vcmask 1046528
    %v350 = vrot.slane %v103, 1
    %v351 = vrot.slane %v105, 1
    %v352 = vsel %vm349, %v350, %v351
    %v353 = vrot.slane %v104, 1
    %v354 = vrot.slane %v106, 1
    %v355 = vsel %vm349, %v353, %v354
    %v356 = vld [vmem:[#allocation2 + $0x80] sm:$0xff]
    %v357 = vld [vmem:[#allocation2 + $0x88] sm:$0xff]
    %v358 = vld [vmem:[#allocation2 + $0x90] sm:$0xff]
    %v359 = vld [vmem:[#allocation2 + $0x98] sm:$0xff]
    %v360 = vld [vmem:[#allocation2 + $0xa0] sm:$0xff]
    %v361 = vld [vmem:[#allocation2 + $0xa8] sm:$0xff]
    %v362 = vld [vmem:[#allocation2 + $0xb0] sm:$0xff]
    %v363 = vld [vmem:[#allocation2 + $0xb8] sm:$0xff]
    %v372 = vunpack.c.l.b16 %v356
    %v373 = vunpack.c.h.b16 %v356
    %v374 = vunpack.c.l.b16 %v357
    %v375 = vunpack.c.h.b16 %v357
    %v376 = vunpack.c.l.b16 %v358
    %v377 = vunpack.c.h.b16 %v358
    %v378 = vunpack.c.l.b16 %v359
    %v379 = vunpack.c.h.b16 %v359
    %v380 = vunpack.c.l.b16 %v360
    %v381 = vunpack.c.h.b16 %v360
    %v382 = vunpack.c.l.b16 %v361
    %v383 = vunpack.c.h.b16 %v361
    %v384 = vunpack.c.l.b16 %v362
    %v385 = vunpack.c.h.b16 %v362
    %v386 = vunpack.c.l.b16 %v363
    %v387 = vunpack.c.h.b16 %v363
    %v388 = vpack.c.b16 %v374, %v372
    %v389 = vpack.c.b16 %v375, %v373
    %v390 = vpack.c.b16 %v378, %v376
    %v391 = vpack.c.b16 %v379, %v377
    %v392 = vpack.c.b16 %v382, %v380
    %v393 = vpack.c.b16 %v383, %v381
    %v394 = vpack.c.b16 %v386, %v384
    %v395 = vpack.c.b16 %v387, %v385
    %v405 = vsel %vm188, %v352, 0
    %v408 = vsel %vm188, %v355, 0
    %410 = vmatprep.subr.bf16.mxu0 %v389
    %411 = vmatpush1.bf16.msra.mxu0 %v388
    %412 = vmatprep.subr.bf16.mxu0 %v391
    %413 = vmatpush1.bf16.msra.mxu0 %v390
    %414 = vmatprep.subr.bf16.mxu0 %v393
    %415 = vmatpush1.bf16.msra.mxu0 %v392
    %416 = vmatprep.subr.bf16.mxu0 %v395
    %417 = vmatpush1.bf16.msra.mxu0 %v394
    %418 = vmatprep.subr.bf16.mxu0 0
    %419 = vmatpush1.bf16.msra.mxu0 0
    %420 = vmatprep.subr.bf16.mxu0 0
    %421 = vmatpush1.bf16.msra.mxu0 0
    %422 = vmatprep.subr.bf16.mxu0 0
    %423 = vmatpush1.bf16.msra.mxu0 0
    %424 = vmatprep.subr.bf16.mxu0 0
    %425 = vmatpush1.bf16.msra.mxu0 0
    %426 = vmatprep.subr.bf16.mxu0 0
    %427 = vmatpush1.bf16.msra.mxu0 0
    %428 = vmatprep.subr.bf16.mxu0 0
    %429 = vmatpush1.bf16.msra.mxu0 0
    %430 = vmatprep.subr.bf16.mxu0 0
    %431 = vmatpush1.bf16.msra.mxu0 0
    %432 = vmatprep.subr.bf16.mxu0 0
    %433 = vmatpush1.bf16.msra.mxu0 0
    %434 = vmatprep.subr.bf16.mxu0 0
    %435 = vmatpush1.bf16.msra.mxu0 0
    %436 = vmatprep.subr.bf16.mxu0 0
    %437 = vmatpush1.bf16.msra.mxu0 0
    %438 = vmatprep.subr.bf16.mxu0 0
    %439 = vmatpush1.bf16.msra.mxu0 0
    %440 = vmatprep.subr.bf16.mxu0 0
    %441 = vmatpush1.bf16.msra.mxu0 0
    %442 = vmatprep.mubr.bf16.mxu0 0
    %443 = vmatmul.mubr.bf16.gmra.mrb[0].mxu0 %v405
    %v444 = vpop.f32.mrb[0].mxu0
    %v445 = vadd.f32 0.0, %v444
    %v446 = vpop.f32.mrb[0].mxu0
    %v447 = vadd.f32 0.0, %v446
    %v448 = vpop.f32.mrb[0].mxu0
    %v449 = vadd.f32 0.0, %v448
    %v450 = vpop.f32.mrb[0].mxu0
    %v451 = vadd.f32 0.0, %v450
    %452 = vmatprep.mubr.bf16.mxu0 0
    %453 = vmatmul.mubr.bf16.gmra.mrb[0].mxu0 %v408
    %v454 = vpop.f32.mrb[0].mxu0
    %v455 = vadd.f32 0.0, %v454
    %v456 = vpop.f32.mrb[0].mxu0
    %v457 = vadd.f32 0.0, %v456
    %v458 = vpop.f32.mrb[0].mxu0
    %v459 = vadd.f32 0.0, %v458
    %v460 = vpop.f32.mrb[0].mxu0
    %v461 = vadd.f32 0.0, %v460
    %462 = vdwg.mxu0
    %v463 = vadd.f32 %v327, %v445
    %v464 = vadd.f32 %v329, %v447
    %v465 = vadd.f32 %v331, %v449
    %v466 = vadd.f32 %v333, %v451
    %v467 = vadd.f32 %v337, %v455
    %v468 = vadd.f32 %v339, %v457
    %v469 = vadd.f32 %v341, %v459
    %v470 = vadd.f32 %v343, %v461
    %v471 = vld [vmem:[%s4] sm:$0x77]
    %v473 = vlaneseq
    %v474 = vshrl.u32 %v473, 7
    %v475 = vsub.s32 0, %v474
    %v476 = vrot.slane %v471, %v475
    %v477 = vlaneseq
    %v478 = vshrl.u32 %v477, 7
    %v479 = vsub.s32 4, %v478
    %v480 = vrot.slane %v471, %v479
    %v483 = vlaneseq
    %v484 = vshrl.u32 %v483, 7
    %v485 = vsub.s32 0, %v484
    %v486 = vrot.slane %v476, %v485
    %v487 = vlaneseq
    %v488 = vshrl.u32 %v487, 7
    %v489 = vsub.s32 0, %v488
    %v490 = vrot.slane %v480, %v489
    %v491 = vadd.f32 %v463, %v486
    %v492 = vadd.f32 %v464, %v490
    %v493 = vadd.f32 %v465, %v486
    %v494 = vadd.f32 %v466, %v490
    %v495 = vadd.f32 %v467, %v486
    %v496 = vadd.f32 %v468, %v490
    %v497 = vadd.f32 %v469, %v486
    %v498 = vadd.f32 %v470, %v490
    %v499 = vmax.f32 %v491, 0.0
    %v500 = vmax.f32 %v492, 0.0
    %v501 = vmax.f32 %v493, 0.0
    %v502 = vmax.f32 %v494, 0.0
    %v503 = vmax.f32 %v495, 0.0
    %v504 = vmax.f32 %v496, 0.0
    %v505 = vmax.f32 %v497, 0.0
    %v506 = vmax.f32 %v498, 0.0
    %v507 = vadd.f32 %v499, %v501
    %v508 = vadd.f32 %v507, %v503
    %v509 = vadd.f32 %v508, %v505
    %v510 = vrot.slane %v509, 4
    %v511 = vadd.f32 %v509, %v510
    %v512 = vrot.slane %v511, 2
    %v513 = vadd.f32 %v511, %v512
    %v514 = vrot.slane %v513, 1
    %v515 = vadd.f32 %v513, %v514
    %v516 = vadd.f32 %v500, %v502
    %v517 = vadd.f32 %v516, %v504
    %v518 = vadd.f32 %v517, %v506
    %v519 = vrot.slane %v518, 4
    %v520 = vadd.f32 %v518, %v519
    %v521 = vrot.slane %v520, 2
    %v522 = vadd.f32 %v520, %v521
    %v523 = vrot.slane %v522, 1
    %v524 = vadd.f32 %v522, %v523
    %v525 = vrcp.pop 32.0
    %v526 = vmul.f32 %v515, %v525
    %v527 = vmul.f32 %v524, %v525
    %v528 = vmul.f32 %v499, %v499
    %v529 = vmul.f32 %v500, %v500
    %v530 = vmul.f32 %v501, %v501
    %v531 = vmul.f32 %v502, %v502
    %v532 = vmul.f32 %v503, %v503
    %v533 = vmul.f32 %v504, %v504
    %v534 = vmul.f32 %v505, %v505
    %v535 = vmul.f32 %v506, %v506
    %v536 = vadd.f32 %v528, %v530
    %v537 = vadd.f32 %v536, %v532
    %v538 = vadd.f32 %v537, %v534
    %v539 = vrot.slane %v538, 4
    %v540 = vadd.f32 %v538, %v539
    %v541 = vrot.slane %v540, 2
    %v542 = vadd.f32 %v540, %v541
    %v543 = vrot.slane %v542, 1
    %v544 = vadd.f32 %v542, %v543
    %v545 = vadd.f32 %v529, %v531
    %v546 = vadd.f32 %v545, %v533
    %v547 = vadd.f32 %v546, %v535
    %v548 = vrot.slane %v547, 4
    %v549 = vadd.f32 %v547, %v548
    %v550 = vrot.slane %v549, 2
    %v551 = vadd.f32 %v549, %v550
    %v552 = vrot.slane %v551, 1
    %v553 = vadd.f32 %v551, %v552
    %v554 = vmul.f32 %v544, %v525
    %v555 = vmul.f32 %v553, %v525
    %v556 = vmul.f32 %v526, %v526
    %v557 = vmul.f32 %v527, %v527
    %v558 = vsub.f32 %v554, %v556
    %v559 = vsub.f32 %v555, %v557
    %v560 = vmax.f32 %v558, 0.0
    %v561 = vmax.f32 %v559, 0.0
    %v562 = vadd.f32 %v560, 1e-05
    %v563 = vadd.f32 %v561, 1e-05
    %v564 = vrsqrt.pop %v562
    %v565 = vrsqrt.pop %v563
    %v568 = vcombine.low %v564, %v565
    %v569 = vrot.slane %v568, 7
    %v571 = vmul.f32 %v471, %v569
    %v573 = vlaneseq
    %v574 = vshrl.u32 %v573, 7
    %v575 = vsub.s32 1, %v574
    %v576 = vrot.slane %v571, %v575
    %v577 = vlaneseq
    %v578 = vshrl.u32 %v577, 7
    %v579 = vsub.s32 5, %v578
    %v580 = vrot.slane %v571, %v579
    %v583 = vmul.f32 %v526, %v576
    %v584 = vmul.f32 %v527, %v580
    %v587 = vcombine.low %v583, %v584
    %v588 = vrot.slane %v587, 6
    %v590 = vsub.f32 %v471, %v588
    %v591 = vlaneseq
    %v592 = vshrl.u32 %v591, 7
    %v593 = vsub.s32 1, %v592
    %v594 = vrot.slane %v576, %v593
    %v595 = vlaneseq
    %v596 = vshrl.u32 %v595, 7
    %v597 = vsub.s32 1, %v596
    %v598 = vrot.slane %v580, %v597
    %v599 = vmul.f32 %v499, %v594
    %v600 = vmul.f32 %v500, %v598
    %v601 = vmul.f32 %v501, %v594
    %v602 = vmul.f32 %v502, %v598
    %v603 = vmul.f32 %v503, %v594
    %v604 = vmul.f32 %v504, %v598
    %v605 = vmul.f32 %v505, %v594
    %v606 = vmul.f32 %v506, %v598
    %v608 = vlaneseq
    %v609 = vshrl.u32 %v608, 7
    %v610 = vsub.s32 2, %v609
    %v611 = vrot.slane %v590, %v610
    %v612 = vlaneseq
    %v613 = vshrl.u32 %v612, 7
    %v614 = vsub.s32 6, %v613
    %v615 = vrot.slane %v590, %v614
    %v618 = vlaneseq
    %v619 = vshrl.u32 %v618, 7
    %v620 = vsub.s32 2, %v619
    %v621 = vrot.slane %v611, %v620
    %v622 = vlaneseq
    %v623 = vshrl.u32 %v622, 7
    %v624 = vsub.s32 2, %v623
    %v625 = vrot.slane %v615, %v624
    %v626 = vadd.f32 %v599, %v621
    %v627 = vadd.f32 %v600, %v625
    %v628 = vadd.f32 %v601, %v621
    %v629 = vadd.f32 %v602, %v625
    %v630 = vadd.f32 %v603, %v621
    %v631 = vadd.f32 %v604, %v625
    %v632 = vadd.f32 %v605, %v621
    %v633 = vadd.f32 %v606, %v625
    %v634 = vpack.c.bf16 %v628, %v626
    %v635 = vpack.c.bf16 %v629, %v627
    %v636 = vpack.c.bf16 %v632, %v630
    %v637 = vpack.c.bf16 %v633, %v631
    %v639 = vshrl.u32 %v634, 16
    %v641 = vrot.slane %v639, 7
    %v642 = vshll.u32 %v634, 16
    %v644 = vor.u32 %v641, %v642
    %v646 = vshrl.u32 %v635, 16
    %v648 = vrot.slane %v646, 7
    %v649 = vshll.u32 %v635, 16
    %v651 = vor.u32 %v648, %v649
    %v653 = vshrl.u32 %v636, 16
    %v655 = vrot.slane %v653, 7
    %v656 = vshll.u32 %v636, 16
    %v658 = vor.u32 %v655, %v656
    %v660 = vshrl.u32 %v637, 16
    %v662 = vrot.slane %v660, 7
    %v663 = vshll.u32 %v637, 16
    %v665 = vor.u32 %v662, %v663
    %v674 = vsel %vm102, 0, %v644
    %v675 = vsel %vm102, 0, %v651
    %v676 = vsel %vm102, 0, %v658
    %v677 = vsel %vm102, 0, %v665
    %v678 = vsel %vm102, %v641, 0
    %v679 = vsel %vm102, %v648, 0
    %v680 = vsel %vm102, %v655, 0
    %v681 = vsel %vm102, %v662, 0
    %v682 = vld [vmem:[#allocation4] sm:$0xf]
    %v683 = vld [vmem:[#allocation4 + $0x4] sm:$0xf]
    %v684 = vld [vmem:[#allocation4 + $0x8] sm:$0xf]
    %v685 = vld [vmem:[#allocation4 + $0xc] sm:$0xf]
    %v686 = vld [vmem:[#allocation4 + $0x10] sm:$0xf]
    %v687 = vld [vmem:[#allocation4 + $0x14] sm:$0xf]
    %v688 = vld [vmem:[#allocation4 + $0x18] sm:$0xf]
    %v689 = vld [vmem:[#allocation4 + $0x1c] sm:$0xf]
    %v690 = vld [vmem:[#allocation4 + $0x20] sm:$0xf]
    %v691 = vld [vmem:[#allocation4 + $0x24] sm:$0xf]
    %v692 = vld [vmem:[#allocation4 + $0x28] sm:$0xf]
    %v693 = vld [vmem:[#allocation4 + $0x2c] sm:$0xf]
    %v694 = vld [vmem:[#allocation4 + $0x30] sm:$0xf]
    %v695 = vld [vmem:[#allocation4 + $0x34] sm:$0xf]
    %v696 = vld [vmem:[#allocation4 + $0x38] sm:$0xf]
    %v697 = vld [vmem:[#allocation4 + $0x3c] sm:$0xf]
    %v698 = vld [vmem:[#allocation4 + $0x40] sm:$0xf]
    %v699 = vld [vmem:[#allocation4 + $0x44] sm:$0xf]
    %v700 = vld [vmem:[#allocation4 + $0x48] sm:$0xf]
    %v701 = vld [vmem:[#allocation4 + $0x4c] sm:$0xf]
    %v702 = vld [vmem:[#allocation4 + $0x50] sm:$0xf]
    %v703 = vld [vmem:[#allocation4 + $0x54] sm:$0xf]
    %v704 = vld [vmem:[#allocation4 + $0x58] sm:$0xf]
    %v705 = vld [vmem:[#allocation4 + $0x5c] sm:$0xf]
    %v706 = vld [vmem:[#allocation4 + $0x60] sm:$0xf]
    %v707 = vld [vmem:[#allocation4 + $0x64] sm:$0xf]
    %v708 = vld [vmem:[#allocation4 + $0x68] sm:$0xf]
    %v709 = vld [vmem:[#allocation4 + $0x6c] sm:$0xf]
    %v710 = vld [vmem:[#allocation4 + $0x70] sm:$0xf]
    %v711 = vld [vmem:[#allocation4 + $0x74] sm:$0xf]
    %v712 = vld [vmem:[#allocation4 + $0x78] sm:$0xf]
    %v713 = vld [vmem:[#allocation4 + $0x7c] sm:$0xf]
    %v715 = vshrl.u32 %v674, 16
    %v717 = vshll.u32 %v674, 16
    %v719 = vrot.slane %v717, 1
    %v720 = vor.u32 %v715, %v719
    %v722 = vshll.u32 %v678, 16
    %v724 = vrot.slane %v722, 1
    %v725 = vsel %vm115, %v720, %v724
    %v727 = vshrl.u32 %v675, 16
    %v729 = vshll.u32 %v675, 16
    %v731 = vrot.slane %v729, 1
    %v732 = vor.u32 %v727, %v731
    %v734 = vshll.u32 %v679, 16
    %v736 = vrot.slane %v734, 1
    %v737 = vsel %vm115, %v732, %v736
    %v739 = vshrl.u32 %v676, 16
    %v741 = vshll.u32 %v676, 16
    %v743 = vrot.slane %v741, 1
    %v744 = vor.u32 %v739, %v743
    %v746 = vshll.u32 %v680, 16
    %v748 = vrot.slane %v746, 1
    %v749 = vsel %vm115, %v744, %v748
    %v751 = vshrl.u32 %v677, 16
    %v753 = vshll.u32 %v677, 16
    %v755 = vrot.slane %v753, 1
    %v756 = vor.u32 %v751, %v755
    %v758 = vshll.u32 %v681, 16
    %v760 = vrot.slane %v758, 1
    %v761 = vsel %vm115, %v756, %v760
    %v766 = vld [vmem:[#allocation4 + $0x80] sm:$0xf]
    %v767 = vld [vmem:[#allocation4 + $0x84] sm:$0xf]
    %v768 = vld [vmem:[#allocation4 + $0x88] sm:$0xf]
    %v769 = vld [vmem:[#allocation4 + $0x8c] sm:$0xf]
    %v770 = vld [vmem:[#allocation4 + $0x90] sm:$0xf]
    %v771 = vld [vmem:[#allocation4 + $0x94] sm:$0xf]
    %v772 = vld [vmem:[#allocation4 + $0x98] sm:$0xf]
    %v773 = vld [vmem:[#allocation4 + $0x9c] sm:$0xf]
    %v774 = vld [vmem:[#allocation4 + $0xa0] sm:$0xf]
    %v775 = vld [vmem:[#allocation4 + $0xa4] sm:$0xf]
    %v776 = vld [vmem:[#allocation4 + $0xa8] sm:$0xf]
    %v777 = vld [vmem:[#allocation4 + $0xac] sm:$0xf]
    %v778 = vld [vmem:[#allocation4 + $0xb0] sm:$0xf]
    %v779 = vld [vmem:[#allocation4 + $0xb4] sm:$0xf]
    %v780 = vld [vmem:[#allocation4 + $0xb8] sm:$0xf]
    %v781 = vld [vmem:[#allocation4 + $0xbc] sm:$0xf]
    %v782 = vld [vmem:[#allocation4 + $0xc0] sm:$0xf]
    %v783 = vld [vmem:[#allocation4 + $0xc4] sm:$0xf]
    %v784 = vld [vmem:[#allocation4 + $0xc8] sm:$0xf]
    %v785 = vld [vmem:[#allocation4 + $0xcc] sm:$0xf]
    %v786 = vld [vmem:[#allocation4 + $0xd0] sm:$0xf]
    %v787 = vld [vmem:[#allocation4 + $0xd4] sm:$0xf]
    %v788 = vld [vmem:[#allocation4 + $0xd8] sm:$0xf]
    %v789 = vld [vmem:[#allocation4 + $0xdc] sm:$0xf]
    %v790 = vld [vmem:[#allocation4 + $0xe0] sm:$0xf]
    %v791 = vld [vmem:[#allocation4 + $0xe4] sm:$0xf]
    %v792 = vld [vmem:[#allocation4 + $0xe8] sm:$0xf]
    %v793 = vld [vmem:[#allocation4 + $0xec] sm:$0xf]
    %v794 = vld [vmem:[#allocation4 + $0xf0] sm:$0xf]
    %v795 = vld [vmem:[#allocation4 + $0xf4] sm:$0xf]
    %v796 = vld [vmem:[#allocation4 + $0xf8] sm:$0xf]
    %v797 = vld [vmem:[#allocation4 + $0xfc] sm:$0xf]
    %v830 = vunpack.c.l.b16 %v766
    %v831 = vunpack.c.l.b16 %v767
    %v832 = vunpack.c.l.b16 %v768
    %v833 = vunpack.c.l.b16 %v769
    %v834 = vunpack.c.l.b16 %v770
    %v835 = vunpack.c.l.b16 %v771
    %v836 = vunpack.c.l.b16 %v772
    %v837 = vunpack.c.l.b16 %v773
    %v838 = vunpack.c.l.b16 %v774
    %v839 = vunpack.c.l.b16 %v775
    %v840 = vunpack.c.l.b16 %v776
    %v841 = vunpack.c.l.b16 %v777
    %v842 = vunpack.c.l.b16 %v778
    %v843 = vunpack.c.l.b16 %v779
    %v844 = vunpack.c.l.b16 %v780
    %v845 = vunpack.c.l.b16 %v781
    %v846 = vunpack.c.l.b16 %v782
    %v847 = vunpack.c.l.b16 %v783
    %v848 = vunpack.c.l.b16 %v784
    %v849 = vunpack.c.l.b16 %v785
    %v850 = vunpack.c.l.b16 %v786
    %v851 = vunpack.c.l.b16 %v787
    %v852 = vunpack.c.l.b16 %v788
    %v853 = vunpack.c.l.b16 %v789
    %v854 = vunpack.c.l.b16 %v790
    %v855 = vunpack.c.l.b16 %v791
    %v856 = vunpack.c.l.b16 %v792
    %v857 = vunpack.c.l.b16 %v793
    %v858 = vunpack.c.l.b16 %v794
    %v859 = vunpack.c.l.b16 %v795
    %v860 = vunpack.c.l.b16 %v796
    %v861 = vunpack.c.l.b16 %v797
    %v862 = vpack.c.b16 %v831, %v830
    %v863 = vpack.c.b16 %v833, %v832
    %v864 = vpack.c.b16 %v835, %v834
    %v865 = vpack.c.b16 %v837, %v836
    %v866 = vpack.c.b16 %v839, %v838
    %v867 = vpack.c.b16 %v841, %v840
    %v868 = vpack.c.b16 %v843, %v842
    %v869 = vpack.c.b16 %v845, %v844
    %v870 = vpack.c.b16 %v847, %v846
    %v871 = vpack.c.b16 %v849, %v848
    %v872 = vpack.c.b16 %v851, %v850
    %v873 = vpack.c.b16 %v853, %v852
    %v874 = vpack.c.b16 %v855, %v854
    %v875 = vpack.c.b16 %v857, %v856
    %v876 = vpack.c.b16 %v859, %v858
    %v877 = vpack.c.b16 %v861, %v860
    %894 = vmatprep.subr.bf16.mxu0 0
    %895 = vmatpush1.bf16.msra.mxu0 %v862
    %896 = vmatprep.subr.bf16.mxu0 0
    %897 = vmatpush1.bf16.msra.mxu0 %v863
    %898 = vmatprep.subr.bf16.mxu0 0
    %899 = vmatpush1.bf16.msra.mxu0 %v864
    %900 = vmatprep.subr.bf16.mxu0 0
    %901 = vmatpush1.bf16.msra.mxu0 %v865
    %902 = vmatprep.subr.bf16.mxu0 0
    %903 = vmatpush1.bf16.msra.mxu0 %v866
    %904 = vmatprep.subr.bf16.mxu0 0
    %905 = vmatpush1.bf16.msra.mxu0 %v867
    %906 = vmatprep.subr.bf16.mxu0 0
    %907 = vmatpush1.bf16.msra.mxu0 %v868
    %908 = vmatprep.subr.bf16.mxu0 0
    %909 = vmatpush1.bf16.msra.mxu0 %v869
    %910 = vmatprep.subr.bf16.mxu0 0
    %911 = vmatpush1.bf16.msra.mxu0 %v870
    %912 = vmatprep.subr.bf16.mxu0 0
    %913 = vmatpush1.bf16.msra.mxu0 %v871
    %914 = vmatprep.subr.bf16.mxu0 0
    %915 = vmatpush1.bf16.msra.mxu0 %v872
    %916 = vmatprep.subr.bf16.mxu0 0
    %917 = vmatpush1.bf16.msra.mxu0 %v873
    %918 = vmatprep.subr.bf16.mxu0 0
    %919 = vmatpush1.bf16.msra.mxu0 %v874
    %920 = vmatprep.subr.bf16.mxu0 0
    %921 = vmatpush1.bf16.msra.mxu0 %v875
    %922 = vmatprep.subr.bf16.mxu0 0
    %923 = vmatpush1.bf16.msra.mxu0 %v876
    %924 = vmatprep.subr.bf16.mxu0 0
    %925 = vmatpush1.bf16.msra.mxu0 %v877
    %926 = vmatprep.mubr.bf16.mxu0 %v737
    %927 = vmatmul.mubr.bf16.gmra.mrb[0].mxu0 %v725
    %v928 = vpop.f32.mrb[0].mxu0
    %v929 = vadd.f32 0.0, %v928
    %v930 = vpop.f32.mrb[0].mxu0
    %v931 = vpop.f32.mrb[0].mxu0
    %v932 = vadd.f32 0.0, %v931
    %v933 = vpop.f32.mrb[0].mxu0
    %934 = vmatprep.mubr.bf16.mxu0 %v761
    %935 = vmatmul.mubr.bf16.gmra.mrb[0].mxu0 %v749
    %v936 = vpop.f32.mrb[0].mxu0
    %v937 = vadd.f32 0.0, %v936
    %v938 = vpop.f32.mrb[0].mxu0
    %v939 = vpop.f32.mrb[0].mxu0
    %v940 = vadd.f32 0.0, %v939
    %v941 = vpop.f32.mrb[0].mxu0
    %942 = vdwg.mxu0
    %v975 = vunpack.c.l.b16 %v682
    %v976 = vunpack.c.l.b16 %v683
    %v977 = vunpack.c.l.b16 %v684
    %v978 = vunpack.c.l.b16 %v685
    %v979 = vunpack.c.l.b16 %v686
    %v980 = vunpack.c.l.b16 %v687
    %v981 = vunpack.c.l.b16 %v688
    %v982 = vunpack.c.l.b16 %v689
    %v983 = vunpack.c.l.b16 %v690
    %v984 = vunpack.c.l.b16 %v691
    %v985 = vunpack.c.l.b16 %v692
    %v986 = vunpack.c.l.b16 %v693
    %v987 = vunpack.c.l.b16 %v694
    %v988 = vunpack.c.l.b16 %v695
    %v989 = vunpack.c.l.b16 %v696
    %v990 = vunpack.c.l.b16 %v697
    %v991 = vunpack.c.l.b16 %v698
    %v992 = vunpack.c.l.b16 %v699
    %v993 = vunpack.c.l.b16 %v700
    %v994 = vunpack.c.l.b16 %v701
    %v995 = vunpack.c.l.b16 %v702
    %v996 = vunpack.c.l.b16 %v703
    %v997 = vunpack.c.l.b16 %v704
    %v998 = vunpack.c.l.b16 %v705
    %v999 = vunpack.c.l.b16 %v706
    %v1000 = vunpack.c.l.b16 %v707
    %v1001 = vunpack.c.l.b16 %v708
    %v1002 = vunpack.c.l.b16 %v709
    %v1003 = vunpack.c.l.b16 %v710
    %v1004 = vunpack.c.l.b16 %v711
    %v1005 = vunpack.c.l.b16 %v712
    %v1006 = vunpack.c.l.b16 %v713
    %v1007 = vpack.c.b16 %v976, %v975
    %v1008 = vpack.c.b16 %v978, %v977
    %v1009 = vpack.c.b16 %v980, %v979
    %v1010 = vpack.c.b16 %v982, %v981
    %v1011 = vpack.c.b16 %v984, %v983
    %v1012 = vpack.c.b16 %v986, %v985
    %v1013 = vpack.c.b16 %v988, %v987
    %v1014 = vpack.c.b16 %v990, %v989
    %v1015 = vpack.c.b16 %v992, %v991
    %v1016 = vpack.c.b16 %v994, %v993
    %v1017 = vpack.c.b16 %v996, %v995
    %v1018 = vpack.c.b16 %v998, %v997
    %v1019 = vpack.c.b16 %v1000, %v999
    %v1020 = vpack.c.b16 %v1002, %v1001
    %v1021 = vpack.c.b16 %v1004, %v1003
    %v1022 = vpack.c.b16 %v1006, %v1005
    %1039 = vmatprep.subr.bf16.mxu0 0
    %1040 = vmatpush1.bf16.msra.mxu0 %v1007
    %1041 = vmatprep.subr.bf16.mxu0 0
    %1042 = vmatpush1.bf16.msra.mxu0 %v1008
    %1043 = vmatprep.subr.bf16.mxu0 0
    %1044 = vmatpush1.bf16.msra.mxu0 %v1009
    %1045 = vmatprep.subr.bf16.mxu0 0
    %1046 = vmatpush1.bf16.msra.mxu0 %v1010
    %1047 = vmatprep.subr.bf16.mxu0 0
    %1048 = vmatpush1.bf16.msra.mxu0 %v1011
    %1049 = vmatprep.subr.bf16.mxu0 0
    %1050 = vmatpush1.bf16.msra.mxu0 %v1012
    %1051 = vmatprep.subr.bf16.mxu0 0
    %1052 = vmatpush1.bf16.msra.mxu0 %v1013
    %1053 = vmatprep.subr.bf16.mxu0 0
    %1054 = vmatpush1.bf16.msra.mxu0 %v1014
    %1055 = vmatprep.subr.bf16.mxu0 0
    %1056 = vmatpush1.bf16.msra.mxu0 %v1015
    %1057 = vmatprep.subr.bf16.mxu0 0
    %1058 = vmatpush1.bf16.msra.mxu0 %v1016
    %1059 = vmatprep.subr.bf16.mxu0 0
    %1060 = vmatpush1.bf16.msra.mxu0 %v1017
    %1061 = vmatprep.subr.bf16.mxu0 0
    %1062 = vmatpush1.bf16.msra.mxu0 %v1018
    %1063 = vmatprep.subr.bf16.mxu0 0
    %1064 = vmatpush1.bf16.msra.mxu0 %v1019
    %1065 = vmatprep.subr.bf16.mxu0 0
    %1066 = vmatpush1.bf16.msra.mxu0 %v1020
    %1067 = vmatprep.subr.bf16.mxu0 0
    %1068 = vmatpush1.bf16.msra.mxu0 %v1021
    %1069 = vmatprep.subr.bf16.mxu0 0
    %1070 = vmatpush1.bf16.msra.mxu0 %v1022
    %1071 = vmatprep.mubr.bf16.mxu0 %v675
    %1072 = vmatmul.mubr.bf16.gmra.mrb[0].mxu0 %v674
    %v1073 = vpop.f32.mrb[0].mxu0
    %v1074 = vadd.f32 %v929, %v1073
    %v1075 = vpop.f32.mrb[0].mxu0
    %v1076 = vpop.f32.mrb[0].mxu0
    %v1077 = vadd.f32 %v932, %v1076
    %v1078 = vpop.f32.mrb[0].mxu0
    %1079 = vmatprep.mubr.bf16.mxu0 %v677
    %1080 = vmatmul.mubr.bf16.gmra.mrb[0].mxu0 %v676
    %v1081 = vpop.f32.mrb[0].mxu0
    %v1082 = vadd.f32 %v937, %v1081
    %v1083 = vpop.f32.mrb[0].mxu0
    %v1084 = vpop.f32.mrb[0].mxu0
    %v1085 = vadd.f32 %v940, %v1084
    %v1086 = vpop.f32.mrb[0].mxu0
    %1087 = vdwg.mxu0
    %v1096 = vrot.slane %v674, 1
    %v1097 = vrot.slane %v678, 1
    %v1098 = vsel %vm349, %v1096, %v1097
    %v1099 = vrot.slane %v675, 1
    %v1100 = vrot.slane %v679, 1
    %v1101 = vsel %vm349, %v1099, %v1100
    %v1102 = vrot.slane %v676, 1
    %v1103 = vrot.slane %v680, 1
    %v1104 = vsel %vm349, %v1102, %v1103
    %v1105 = vrot.slane %v677, 1
    %v1106 = vrot.slane %v681, 1
    %v1107 = vsel %vm349, %v1105, %v1106
    %v1112 = vld [vmem:[#allocation4 + $0x100] sm:$0xf]
    %v1113 = vld [vmem:[#allocation4 + $0x104] sm:$0xf]
    %v1114 = vld [vmem:[#allocation4 + $0x108] sm:$0xf]
    %v1115 = vld [vmem:[#allocation4 + $0x10c] sm:$0xf]
    %v1116 = vld [vmem:[#allocation4 + $0x110] sm:$0xf]
    %v1117 = vld [vmem:[#allocation4 + $0x114] sm:$0xf]
    %v1118 = vld [vmem:[#allocation4 + $0x118] sm:$0xf]
    %v1119 = vld [vmem:[#allocation4 + $0x11c] sm:$0xf]
    %v1120 = vld [vmem:[#allocation4 + $0x120] sm:$0xf]
    %v1121 = vld [vmem:[#allocation4 + $0x124] sm:$0xf]
    %v1122 = vld [vmem:[#allocation4 + $0x128] sm:$0xf]
    %v1123 = vld [vmem:[#allocation4 + $0x12c] sm:$0xf]
    %v1124 = vld [vmem:[#allocation4 + $0x130] sm:$0xf]
    %v1125 = vld [vmem:[#allocation4 + $0x134] sm:$0xf]
    %v1126 = vld [vmem:[#allocation4 + $0x138] sm:$0xf]
    %v1127 = vld [vmem:[#allocation4 + $0x13c] sm:$0xf]
    %v1128 = vld [vmem:[#allocation4 + $0x140] sm:$0xf]
    %v1129 = vld [vmem:[#allocation4 + $0x144] sm:$0xf]
    %v1130 = vld [vmem:[#allocation4 + $0x148] sm:$0xf]
    %v1131 = vld [vmem:[#allocation4 + $0x14c] sm:$0xf]
    %v1132 = vld [vmem:[#allocation4 + $0x150] sm:$0xf]
    %v1133 = vld [vmem:[#allocation4 + $0x154] sm:$0xf]
    %v1134 = vld [vmem:[#allocation4 + $0x158] sm:$0xf]
    %v1135 = vld [vmem:[#allocation4 + $0x15c] sm:$0xf]
    %v1136 = vld [vmem:[#allocation4 + $0x160] sm:$0xf]
    %v1137 = vld [vmem:[#allocation4 + $0x164] sm:$0xf]
    %v1138 = vld [vmem:[#allocation4 + $0x168] sm:$0xf]
    %v1139 = vld [vmem:[#allocation4 + $0x16c] sm:$0xf]
    %v1140 = vld [vmem:[#allocation4 + $0x170] sm:$0xf]
    %v1141 = vld [vmem:[#allocation4 + $0x174] sm:$0xf]
    %v1142 = vld [vmem:[#allocation4 + $0x178] sm:$0xf]
    %v1143 = vld [vmem:[#allocation4 + $0x17c] sm:$0xf]
    %v1176 = vunpack.c.l.b16 %v1112
    %v1177 = vunpack.c.l.b16 %v1113
    %v1178 = vunpack.c.l.b16 %v1114
    %v1179 = vunpack.c.l.b16 %v1115
    %v1180 = vunpack.c.l.b16 %v1116
    %v1181 = vunpack.c.l.b16 %v1117
    %v1182 = vunpack.c.l.b16 %v1118
    %v1183 = vunpack.c.l.b16 %v1119
    %v1184 = vunpack.c.l.b16 %v1120
    %v1185 = vunpack.c.l.b16 %v1121
    %v1186 = vunpack.c.l.b16 %v1122
    %v1187 = vunpack.c.l.b16 %v1123
    %v1188 = vunpack.c.l.b16 %v1124
    %v1189 = vunpack.c.l.b16 %v1125
    %v1190 = vunpack.c.l.b16 %v1126
    %v1191 = vunpack.c.l.b16 %v1127
    %v1192 = vunpack.c.l.b16 %v1128
    %v1193 = vunpack.c.l.b16 %v1129
    %v1194 = vunpack.c.l.b16 %v1130
    %v1195 = vunpack.c.l.b16 %v1131
    %v1196 = vunpack.c.l.b16 %v1132
    %v1197 = vunpack.c.l.b16 %v1133
    %v1198 = vunpack.c.l.b16 %v1134
    %v1199 = vunpack.c.l.b16 %v1135
    %v1200 = vunpack.c.l.b16 %v1136
    %v1201 = vunpack.c.l.b16 %v1137
    %v1202 = vunpack.c.l.b16 %v1138
    %v1203 = vunpack.c.l.b16 %v1139
    %v1204 = vunpack.c.l.b16 %v1140
    %v1205 = vunpack.c.l.b16 %v1141
    %v1206 = vunpack.c.l.b16 %v1142
    %v1207 = vunpack.c.l.b16 %v1143
    %v1208 = vpack.c.b16 %v1177, %v1176
    %v1209 = vpack.c.b16 %v1179, %v1178
    %v1210 = vpack.c.b16 %v1181, %v1180
    %v1211 = vpack.c.b16 %v1183, %v1182
    %v1212 = vpack.c.b16 %v1185, %v1184
    %v1213 = vpack.c.b16 %v1187, %v1186
    %v1214 = vpack.c.b16 %v1189, %v1188
    %v1215 = vpack.c.b16 %v1191, %v1190
    %v1216 = vpack.c.b16 %v1193, %v1192
    %v1217 = vpack.c.b16 %v1195, %v1194
    %v1218 = vpack.c.b16 %v1197, %v1196
    %v1219 = vpack.c.b16 %v1199, %v1198
    %v1220 = vpack.c.b16 %v1201, %v1200
    %v1221 = vpack.c.b16 %v1203, %v1202
    %v1222 = vpack.c.b16 %v1205, %v1204
    %v1223 = vpack.c.b16 %v1207, %v1206
    %1240 = vmatprep.subr.bf16.mxu0 0
    %1241 = vmatpush1.bf16.msra.mxu0 %v1208
    %1242 = vmatprep.subr.bf16.mxu0 0
    %1243 = vmatpush1.bf16.msra.mxu0 %v1209
    %1244 = vmatprep.subr.bf16.mxu0 0
    %1245 = vmatpush1.bf16.msra.mxu0 %v1210
    %1246 = vmatprep.subr.bf16.mxu0 0
    %1247 = vmatpush1.bf16.msra.mxu0 %v1211
    %1248 = vmatprep.subr.bf16.mxu0 0
    %1249 = vmatpush1.bf16.msra.mxu0 %v1212
    %1250 = vmatprep.subr.bf16.mxu0 0
    %1251 = vmatpush1.bf16.msra.mxu0 %v1213
    %1252 = vmatprep.subr.bf16.mxu0 0
    %1253 = vmatpush1.bf16.msra.mxu0 %v1214
    %1254 = vmatprep.subr.bf16.mxu0 0
    %1255 = vmatpush1.bf16.msra.mxu0 %v1215
    %1256 = vmatprep.subr.bf16.mxu0 0
    %1257 = vmatpush1.bf16.msra.mxu0 %v1216
    %1258 = vmatprep.subr.bf16.mxu0 0
    %1259 = vmatpush1.bf16.msra.mxu0 %v1217
    %1260 = vmatprep.subr.bf16.mxu0 0
    %1261 = vmatpush1.bf16.msra.mxu0 %v1218
    %1262 = vmatprep.subr.bf16.mxu0 0
    %1263 = vmatpush1.bf16.msra.mxu0 %v1219
    %1264 = vmatprep.subr.bf16.mxu0 0
    %1265 = vmatpush1.bf16.msra.mxu0 %v1220
    %1266 = vmatprep.subr.bf16.mxu0 0
    %1267 = vmatpush1.bf16.msra.mxu0 %v1221
    %1268 = vmatprep.subr.bf16.mxu0 0
    %1269 = vmatpush1.bf16.msra.mxu0 %v1222
    %1270 = vmatprep.subr.bf16.mxu0 0
    %1271 = vmatpush1.bf16.msra.mxu0 %v1223
    %1272 = vmatprep.mubr.bf16.mxu0 %v1101
    %1273 = vmatmul.mubr.bf16.gmra.mrb[0].mxu0 %v1098
    %v1274 = vpop.f32.mrb[0].mxu0
    %v1275 = vadd.f32 0.0, %v1274
    %v1276 = vpop.f32.mrb[0].mxu0
    %v1277 = vpop.f32.mrb[0].mxu0
    %v1278 = vadd.f32 0.0, %v1277
    %v1279 = vpop.f32.mrb[0].mxu0
    %1280 = vmatprep.mubr.bf16.mxu0 %v1107
    %1281 = vmatmul.mubr.bf16.gmra.mrb[0].mxu0 %v1104
    %v1282 = vpop.f32.mrb[0].mxu0
    %v1283 = vadd.f32 0.0, %v1282
    %v1284 = vpop.f32.mrb[0].mxu0
    %v1285 = vpop.f32.mrb[0].mxu0
    %v1286 = vadd.f32 0.0, %v1285
    %v1287 = vpop.f32.mrb[0].mxu0
    %1288 = vdwg.mxu0
    %v1289 = vadd.f32 %v1074, %v1275
    %v1290 = vadd.f32 %v1077, %v1278
    %v1291 = vadd.f32 %v1082, %v1283
    %v1292 = vadd.f32 %v1085, %v1286
    %v1293 = vld [vmem:[%s5] sm:$0x7]
    %v1294 = vlaneseq
    %v1295 = vshrl.u32 %v1294, 7
    %v1296 = vsub.s32 0, %v1295
    %v1297 = vrot.slane %v1293, %v1296
    %v1298 = vadd.f32 %v1289, %v1297
    %v1299 = vadd.f32 %v1290, %v1297
    %v1300 = vadd.f32 %v1291, %v1297
    %v1301 = vadd.f32 %v1292, %v1297
    %v1302 = vmax.f32 %v1298, 0.0
    %v1303 = vmax.f32 %v1299, 0.0
    %v1304 = vmax.f32 %v1300, 0.0
    %v1305 = vmax.f32 %v1301, 0.0
    %v1306 = vadd.f32 %v1302, %v1303
    %v1307 = vadd.f32 %v1306, %v1304
    %v1308 = vadd.f32 %v1307, %v1305
    %v1309 = vrot.slane %v1308, 4
    %v1310 = vadd.f32 %v1308, %v1309
    %v1311 = vrot.slane %v1310, 2
    %v1312 = vadd.f32 %v1310, %v1311
    %v1313 = vrot.slane %v1312, 1
    %v1314 = vadd.f32 %v1312, %v1313
    %v1315 = vmul.f32 %v1314, %v525
    %v1316 = vmul.f32 %v1302, %v1302
    %v1317 = vmul.f32 %v1303, %v1303
    %v1318 = vmul.f32 %v1304, %v1304
    %v1319 = vmul.f32 %v1305, %v1305
    %v1320 = vadd.f32 %v1316, %v1317
    %v1321 = vadd.f32 %v1320, %v1318
    %v1322 = vadd.f32 %v1321, %v1319
    %v1323 = vrot.slane %v1322, 4
    %v1324 = vadd.f32 %v1322, %v1323
    %v1325 = vrot.slane %v1324, 2
    %v1326 = vadd.f32 %v1324, %v1325
    %v1327 = vrot.slane %v1326, 1
    %v1328 = vadd.f32 %v1326, %v1327
    %v1329 = vmul.f32 %v1328, %v525
    %v1330 = vmul.f32 %v1315, %v1315
    %v1331 = vsub.f32 %v1329, %v1330
    %v1332 = vmax.f32 %v1331, 0.0
    %v1333 = vadd.f32 %v1332, 1e-05
    %v1334 = vrsqrt.pop %v1333
    %v1335 = vmul.f32 %v1293, %v1334
    %v1336 = vmul.f32 %v1315, %v1335
    %v1338 = vrot.slane %v1336, 7
    %v1340 = vsub.f32 %v1293, %v1338
    %v1341 = vlaneseq
    %v1342 = vshrl.u32 %v1341, 7
    %v1343 = vsub.s32 1, %v1342
    %v1344 = vrot.slane %v1335, %v1343
    %v1345 = vmul.f32 %v1302, %v1344
    %v1346 = vmul.f32 %v1303, %v1344
    %v1347 = vmul.f32 %v1304, %v1344
    %v1348 = vmul.f32 %v1305, %v1344
    %v1349 = vlaneseq
    %v1350 = vshrl.u32 %v1349, 7
    %v1351 = vsub.s32 2, %v1350
    %v1352 = vrot.slane %v1340, %v1351
    %v1353 = vadd.f32 %v1345, %v1352
    %v1354 = vadd.f32 %v1346, %v1352
    %v1355 = vadd.f32 %v1347, %v1352
    %v1356 = vadd.f32 %v1348, %v1352
    %v1357 = vpack.c.bf16 %v1354, %v1353
    %v1358 = vpack.c.bf16 %v1356, %v1355
    %v1360 = vshrl.u32 %v1357, 16
    %v1362 = vrot.slane %v1360, 7
    %v1363 = vshll.u32 %v1357, 16
    %v1365 = vor.u32 %v1362, %v1363
    %v1367 = vshrl.u32 %v1358, 16
    %v1369 = vrot.slane %v1367, 7
    %v1370 = vshll.u32 %v1358, 16
    %v1372 = vor.u32 %v1369, %v1370
    %v1377 = vsel %vm102, 0, %v1365
    %v1378 = vsel %vm102, 0, %v1372
    %v1379 = vsel %vm102, %v1362, 0
    %v1380 = vsel %vm102, %v1369, 0
    %v1381 = vld [vmem:[#allocation6] sm:$0xf]
    %v1382 = vld [vmem:[#allocation6 + $0x4] sm:$0xf]
    %v1383 = vld [vmem:[#allocation6 + $0x8] sm:$0xf]
    %v1384 = vld [vmem:[#allocation6 + $0xc] sm:$0xf]
    %v1385 = vld [vmem:[#allocation6 + $0x10] sm:$0xf]
    %v1386 = vld [vmem:[#allocation6 + $0x14] sm:$0xf]
    %v1387 = vld [vmem:[#allocation6 + $0x18] sm:$0xf]
    %v1388 = vld [vmem:[#allocation6 + $0x1c] sm:$0xf]
    %v1389 = vld [vmem:[#allocation6 + $0x20] sm:$0xf]
    %v1390 = vld [vmem:[#allocation6 + $0x24] sm:$0xf]
    %v1391 = vld [vmem:[#allocation6 + $0x28] sm:$0xf]
    %v1392 = vld [vmem:[#allocation6 + $0x2c] sm:$0xf]
    %v1393 = vld [vmem:[#allocation6 + $0x30] sm:$0xf]
    %v1394 = vld [vmem:[#allocation6 + $0x34] sm:$0xf]
    %v1395 = vld [vmem:[#allocation6 + $0x38] sm:$0xf]
    %v1396 = vld [vmem:[#allocation6 + $0x3c] sm:$0xf]
    %v1398 = vshrl.u32 %v1377, 16
    %v1400 = vshll.u32 %v1377, 16
    %v1402 = vrot.slane %v1400, 1
    %v1403 = vor.u32 %v1398, %v1402
    %v1405 = vshll.u32 %v1379, 16
    %v1407 = vrot.slane %v1405, 1
    %v1408 = vsel %vm115, %v1403, %v1407
    %v1410 = vshrl.u32 %v1378, 16
    %v1412 = vshll.u32 %v1378, 16
    %v1414 = vrot.slane %v1412, 1
    %v1415 = vor.u32 %v1410, %v1414
    %v1417 = vshll.u32 %v1380, 16
    %v1419 = vrot.slane %v1417, 1
    %v1420 = vsel %vm115, %v1415, %v1419
    %v1423 = vld [vmem:[#allocation6 + $0x40] sm:$0xf]
    %v1424 = vld [vmem:[#allocation6 + $0x44] sm:$0xf]
    %v1425 = vld [vmem:[#allocation6 + $0x48] sm:$0xf]
    %v1426 = vld [vmem:[#allocation6 + $0x4c] sm:$0xf]
    %v1427 = vld [vmem:[#allocation6 + $0x50] sm:$0xf]
    %v1428 = vld [vmem:[#allocation6 + $0x54] sm:$0xf]
    %v1429 = vld [vmem:[#allocation6 + $0x58] sm:$0xf]
    %v1430 = vld [vmem:[#allocation6 + $0x5c] sm:$0xf]
    %v1431 = vld [vmem:[#allocation6 + $0x60] sm:$0xf]
    %v1432 = vld [vmem:[#allocation6 + $0x64] sm:$0xf]
    %v1433 = vld [vmem:[#allocation6 + $0x68] sm:$0xf]
    %v1434 = vld [vmem:[#allocation6 + $0x6c] sm:$0xf]
    %v1435 = vld [vmem:[#allocation6 + $0x70] sm:$0xf]
    %v1436 = vld [vmem:[#allocation6 + $0x74] sm:$0xf]
    %v1437 = vld [vmem:[#allocation6 + $0x78] sm:$0xf]
    %v1438 = vld [vmem:[#allocation6 + $0x7c] sm:$0xf]
    %v1455 = vunpack.c.l.b16 %v1423
    %v1456 = vunpack.c.l.b16 %v1424
    %v1457 = vunpack.c.l.b16 %v1425
    %v1458 = vunpack.c.l.b16 %v1426
    %v1459 = vunpack.c.l.b16 %v1427
    %v1460 = vunpack.c.l.b16 %v1428
    %v1461 = vunpack.c.l.b16 %v1429
    %v1462 = vunpack.c.l.b16 %v1430
    %v1463 = vunpack.c.l.b16 %v1431
    %v1464 = vunpack.c.l.b16 %v1432
    %v1465 = vunpack.c.l.b16 %v1433
    %v1466 = vunpack.c.l.b16 %v1434
    %v1467 = vunpack.c.l.b16 %v1435
    %v1468 = vunpack.c.l.b16 %v1436
    %v1469 = vunpack.c.l.b16 %v1437
    %v1470 = vunpack.c.l.b16 %v1438
    %v1471 = vpack.c.b16 %v1456, %v1455
    %v1472 = vpack.c.b16 %v1458, %v1457
    %v1473 = vpack.c.b16 %v1460, %v1459
    %v1474 = vpack.c.b16 %v1462, %v1461
    %v1475 = vpack.c.b16 %v1464, %v1463
    %v1476 = vpack.c.b16 %v1466, %v1465
    %v1477 = vpack.c.b16 %v1468, %v1467
    %v1478 = vpack.c.b16 %v1470, %v1469
    %1487 = vmatprep.subr.bf16.mxu0 0
    %1488 = vmatpush1.bf16.msra.mxu0 %v1471
    %1489 = vmatprep.subr.bf16.mxu0 0
    %1490 = vmatpush1.bf16.msra.mxu0 %v1472
    %1491 = vmatprep.subr.bf16.mxu0 0
    %1492 = vmatpush1.bf16.msra.mxu0 %v1473
    %1493 = vmatprep.subr.bf16.mxu0 0
    %1494 = vmatpush1.bf16.msra.mxu0 %v1474
    %1495 = vmatprep.subr.bf16.mxu0 0
    %1496 = vmatpush1.bf16.msra.mxu0 %v1475
    %1497 = vmatprep.subr.bf16.mxu0 0
    %1498 = vmatpush1.bf16.msra.mxu0 %v1476
    %1499 = vmatprep.subr.bf16.mxu0 0
    %1500 = vmatpush1.bf16.msra.mxu0 %v1477
    %1501 = vmatprep.subr.bf16.mxu0 0
    %1502 = vmatpush1.bf16.msra.mxu0 %v1478
    %1503 = vmatprep.subr.bf16.mxu0 0
    %1504 = vmatpush1.bf16.msra.mxu0 0
    %1505 = vmatprep.subr.bf16.mxu0 0
    %1506 = vmatpush1.bf16.msra.mxu0 0
    %1507 = vmatprep.subr.bf16.mxu0 0
    %1508 = vmatpush1.bf16.msra.mxu0 0
    %1509 = vmatprep.subr.bf16.mxu0 0
    %1510 = vmatpush1.bf16.msra.mxu0 0
    %1511 = vmatprep.subr.bf16.mxu0 0
    %1512 = vmatpush1.bf16.msra.mxu0 0
    %1513 = vmatprep.subr.bf16.mxu0 0
    %1514 = vmatpush1.bf16.msra.mxu0 0
    %1515 = vmatprep.subr.bf16.mxu0 0
    %1516 = vmatpush1.bf16.msra.mxu0 0
    %1517 = vmatprep.subr.bf16.mxu0 0
    %1518 = vmatpush1.bf16.msra.mxu0 0
    %1519 = vmatprep.mubr.bf16.mxu0 0
    %1520 = vmatmul.mubr.bf16.gmra.mrb[0].mxu0 %v1408
    %v1521 = vpop.f32.mrb[0].mxu0
    %v1522 = vadd.f32 0.0, %v1521
    %v1523 = vpop.f32.mrb[0].mxu0
    %v1524 = vpop.f32.mrb[0].mxu0
    %v1525 = vadd.f32 0.0, %v1524
    %v1526 = vpop.f32.mrb[0].mxu0
    %1527 = vmatprep.mubr.bf16.mxu0 0
    %1528 = vmatmul.mubr.bf16.gmra.mrb[0].mxu0 %v1420
    %v1529 = vpop.f32.mrb[0].mxu0
    %v1530 = vadd.f32 0.0, %v1529
    %v1531 = vpop.f32.mrb[0].mxu0
    %v1532 = vpop.f32.mrb[0].mxu0
    %v1533 = vadd.f32 0.0, %v1532
    %v1534 = vpop.f32.mrb[0].mxu0
    %1535 = vdwg.mxu0
    %v1552 = vunpack.c.l.b16 %v1381
    %v1553 = vunpack.c.l.b16 %v1382
    %v1554 = vunpack.c.l.b16 %v1383
    %v1555 = vunpack.c.l.b16 %v1384
    %v1556 = vunpack.c.l.b16 %v1385
    %v1557 = vunpack.c.l.b16 %v1386
    %v1558 = vunpack.c.l.b16 %v1387
    %v1559 = vunpack.c.l.b16 %v1388
    %v1560 = vunpack.c.l.b16 %v1389
    %v1561 = vunpack.c.l.b16 %v1390
    %v1562 = vunpack.c.l.b16 %v1391
    %v1563 = vunpack.c.l.b16 %v1392
    %v1564 = vunpack.c.l.b16 %v1393
    %v1565 = vunpack.c.l.b16 %v1394
    %v1566 = vunpack.c.l.b16 %v1395
    %v1567 = vunpack.c.l.b16 %v1396
    %v1568 = vpack.c.b16 %v1553, %v1552
    %v1569 = vpack.c.b16 %v1555, %v1554
    %v1570 = vpack.c.b16 %v1557, %v1556
    %v1571 = vpack.c.b16 %v1559, %v1558
    %v1572 = vpack.c.b16 %v1561, %v1560
    %v1573 = vpack.c.b16 %v1563, %v1562
    %v1574 = vpack.c.b16 %v1565, %v1564
    %v1575 = vpack.c.b16 %v1567, %v1566
    %1584 = vmatprep.subr.bf16.mxu0 0
    %1585 = vmatpush1.bf16.msra.mxu0 %v1568
    %1586 = vmatprep.subr.bf16.mxu0 0
    %1587 = vmatpush1.bf16.msra.mxu0 %v1569
    %1588 = vmatprep.subr.bf16.mxu0 0
    %1589 = vmatpush1.bf16.msra.mxu0 %v1570
    %1590 = vmatprep.subr.bf16.mxu0 0
    %1591 = vmatpush1.bf16.msra.mxu0 %v1571
    %1592 = vmatprep.subr.bf16.mxu0 0
    %1593 = vmatpush1.bf16.msra.mxu0 %v1572
    %1594 = vmatprep.subr.bf16.mxu0 0
    %1595 = vmatpush1.bf16.msra.mxu0 %v1573
    %1596 = vmatprep.subr.bf16.mxu0 0
    %1597 = vmatpush1.bf16.msra.mxu0 %v1574
    %1598 = vmatprep.subr.bf16.mxu0 0
    %1599 = vmatpush1.bf16.msra.mxu0 %v1575
    %1600 = vmatprep.subr.bf16.mxu0 0
    %1601 = vmatpush1.bf16.msra.mxu0 0
    %1602 = vmatprep.subr.bf16.mxu0 0
    %1603 = vmatpush1.bf16.msra.mxu0 0
    %1604 = vmatprep.subr.bf16.mxu0 0
    %1605 = vmatpush1.bf16.msra.mxu0 0
    %1606 = vmatprep.subr.bf16.mxu0 0
    %1607 = vmatpush1.bf16.msra.mxu0 0
    %1608 = vmatprep.subr.bf16.mxu0 0
    %1609 = vmatpush1.bf16.msra.mxu0 0
    %1610 = vmatprep.subr.bf16.mxu0 0
    %1611 = vmatpush1.bf16.msra.mxu0 0
    %1612 = vmatprep.subr.bf16.mxu0 0
    %1613 = vmatpush1.bf16.msra.mxu0 0
    %1614 = vmatprep.subr.bf16.mxu0 0
    %1615 = vmatpush1.bf16.msra.mxu0 0
    %1616 = vmatprep.mubr.bf16.mxu0 0
    %1617 = vmatmul.mubr.bf16.gmra.mrb[0].mxu0 %v1377
    %v1618 = vpop.f32.mrb[0].mxu0
    %v1619 = vadd.f32 %v1522, %v1618
    %v1620 = vpop.f32.mrb[0].mxu0
    %v1621 = vpop.f32.mrb[0].mxu0
    %v1622 = vadd.f32 %v1525, %v1621
    %v1623 = vpop.f32.mrb[0].mxu0
    %1624 = vmatprep.mubr.bf16.mxu0 0
    %1625 = vmatmul.mubr.bf16.gmra.mrb[0].mxu0 %v1378
    %v1626 = vpop.f32.mrb[0].mxu0
    %v1627 = vadd.f32 %v1530, %v1626
    %v1628 = vpop.f32.mrb[0].mxu0
    %v1629 = vpop.f32.mrb[0].mxu0
    %v1630 = vadd.f32 %v1533, %v1629
    %v1631 = vpop.f32.mrb[0].mxu0
    %1632 = vdwg.mxu0
    %v1637 = vrot.slane %v1377, 1
    %v1638 = vrot.slane %v1379, 1
    %v1639 = vsel %vm349, %v1637, %v1638
    %v1640 = vrot.slane %v1378, 1
    %v1641 = vrot.slane %v1380, 1
    %v1642 = vsel %vm349, %v1640, %v1641
    %v1645 = vld [vmem:[#allocation6 + $0x80] sm:$0xf]
    %v1646 = vld [vmem:[#allocation6 + $0x84] sm:$0xf]
    %v1647 = vld [vmem:[#allocation6 + $0x88] sm:$0xf]
    %v1648 = vld [vmem:[#allocation6 + $0x8c] sm:$0xf]
    %v1649 = vld [vmem:[#allocation6 + $0x90] sm:$0xf]
    %v1650 = vld [vmem:[#allocation6 + $0x94] sm:$0xf]
    %v1651 = vld [vmem:[#allocation6 + $0x98] sm:$0xf]
    %v1652 = vld [vmem:[#allocation6 + $0x9c] sm:$0xf]
    %v1653 = vld [vmem:[#allocation6 + $0xa0] sm:$0xf]
    %v1654 = vld [vmem:[#allocation6 + $0xa4] sm:$0xf]
    %v1655 = vld [vmem:[#allocation6 + $0xa8] sm:$0xf]
    %v1656 = vld [vmem:[#allocation6 + $0xac] sm:$0xf]
    %v1657 = vld [vmem:[#allocation6 + $0xb0] sm:$0xf]
    %v1658 = vld [vmem:[#allocation6 + $0xb4] sm:$0xf]
    %v1659 = vld [vmem:[#allocation6 + $0xb8] sm:$0xf]
    %v1660 = vld [vmem:[#allocation6 + $0xbc] sm:$0xf]
    %v1677 = vunpack.c.l.b16 %v1645
    %v1678 = vunpack.c.l.b16 %v1646
    %v1679 = vunpack.c.l.b16 %v1647
    %v1680 = vunpack.c.l.b16 %v1648
    %v1681 = vunpack.c.l.b16 %v1649
    %v1682 = vunpack.c.l.b16 %v1650
    %v1683 = vunpack.c.l.b16 %v1651
    %v1684 = vunpack.c.l.b16 %v1652
    %v1685 = vunpack.c.l.b16 %v1653
    %v1686 = vunpack.c.l.b16 %v1654
    %v1687 = vunpack.c.l.b16 %v1655
    %v1688 = vunpack.c.l.b16 %v1656
    %v1689 = vunpack.c.l.b16 %v1657
    %v1690 = vunpack.c.l.b16 %v1658
    %v1691 = vunpack.c.l.b16 %v1659
    %v1692 = vunpack.c.l.b16 %v1660
    %v1693 = vpack.c.b16 %v1678, %v1677
    %v1694 = vpack.c.b16 %v1680, %v1679
    %v1695 = vpack.c.b16 %v1682, %v1681
    %v1696 = vpack.c.b16 %v1684, %v1683
    %v1697 = vpack.c.b16 %v1686, %v1685
    %v1698 = vpack.c.b16 %v1688, %v1687
    %v1699 = vpack.c.b16 %v1690, %v1689
    %v1700 = vpack.c.b16 %v1692, %v1691
    %1709 = vmatprep.subr.bf16.mxu0 0
    %1710 = vmatpush1.bf16.msra.mxu0 %v1693
    %1711 = vmatprep.subr.bf16.mxu0 0
    %1712 = vmatpush1.bf16.msra.mxu0 %v1694
    %1713 = vmatprep.subr.bf16.mxu0 0
    %1714 = vmatpush1.bf16.msra.mxu0 %v1695
    %1715 = vmatprep.subr.bf16.mxu0 0
    %1716 = vmatpush1.bf16.msra.mxu0 %v1696
    %1717 = vmatprep.subr.bf16.mxu0 0
    %1718 = vmatpush1.bf16.msra.mxu0 %v1697
    %1719 = vmatprep.subr.bf16.mxu0 0
    %1720 = vmatpush1.bf16.msra.mxu0 %v1698
    %1721 = vmatprep.subr.bf16.mxu0 0
    %1722 = vmatpush1.bf16.msra.mxu0 %v1699
    %1723 = vmatprep.subr.bf16.mxu0 0
    %1724 = vmatpush1.bf16.msra.mxu0 %v1700
    %1725 = vmatprep.subr.bf16.mxu0 0
    %1726 = vmatpush1.bf16.msra.mxu0 0
    %1727 = vmatprep.subr.bf16.mxu0 0
    %1728 = vmatpush1.bf16.msra.mxu0 0
    %1729 = vmatprep.subr.bf16.mxu0 0
    %1730 = vmatpush1.bf16.msra.mxu0 0
    %1731 = vmatprep.subr.bf16.mxu0 0
    %1732 = vmatpush1.bf16.msra.mxu0 0
    %1733 = vmatprep.subr.bf16.mxu0 0
    %1734 = vmatpush1.bf16.msra.mxu0 0
    %1735 = vmatprep.subr.bf16.mxu0 0
    %1736 = vmatpush1.bf16.msra.mxu0 0
    %1737 = vmatprep.subr.bf16.mxu0 0
    %1738 = vmatpush1.bf16.msra.mxu0 0
    %1739 = vmatprep.subr.bf16.mxu0 0
    %1740 = vmatpush1.bf16.msra.mxu0 0
    %1741 = vmatprep.mubr.bf16.mxu0 0
    %1742 = vmatmul.mubr.bf16.gmra.mrb[0].mxu0 %v1639
    %v1743 = vpop.f32.mrb[0].mxu0
    %v1744 = vadd.f32 0.0, %v1743
    %v1745 = vpop.f32.mrb[0].mxu0
    %v1746 = vpop.f32.mrb[0].mxu0
    %v1747 = vadd.f32 0.0, %v1746
    %v1748 = vpop.f32.mrb[0].mxu0
    %1749 = vmatprep.mubr.bf16.mxu0 0
    %1750 = vmatmul.mubr.bf16.gmra.mrb[0].mxu0 %v1642
    %v1751 = vpop.f32.mrb[0].mxu0
    %v1752 = vadd.f32 0.0, %v1751
    %v1753 = vpop.f32.mrb[0].mxu0
    %v1754 = vpop.f32.mrb[0].mxu0
    %v1755 = vadd.f32 0.0, %v1754
    %v1756 = vpop.f32.mrb[0].mxu0
    %1757 = vdwg.mxu0
    %v1758 = vadd.f32 %v1619, %v1744
    %v1759 = vadd.f32 %v1622, %v1747
    %v1760 = vadd.f32 %v1627, %v1752
    %v1761 = vadd.f32 %v1630, %v1755
    %v1762 = vld [vmem:[%s6] sm:$0x7]
    %v1763 = vlaneseq
    %v1764 = vshrl.u32 %v1763, 7
    %v1765 = vsub.s32 0, %v1764
    %v1766 = vrot.slane %v1762, %v1765
    %v1767 = vadd.f32 %v1758, %v1766
    %v1768 = vadd.f32 %v1759, %v1766
    %v1769 = vadd.f32 %v1760, %v1766
    %v1770 = vadd.f32 %v1761, %v1766
    %v1771 = vmax.f32 %v1767, 0.0
    %v1772 = vmax.f32 %v1768, 0.0
    %v1773 = vmax.f32 %v1769, 0.0
    %v1774 = vmax.f32 %v1770, 0.0
    %v1775 = vadd.f32 %v1771, %v1772
    %v1776 = vadd.f32 %v1775, %v1773
    %v1777 = vadd.f32 %v1776, %v1774
    %v1778 = vrot.slane %v1777, 4
    %v1779 = vadd.f32 %v1777, %v1778
    %v1780 = vrot.slane %v1779, 2
    %v1781 = vadd.f32 %v1779, %v1780
    %v1782 = vrot.slane %v1781, 1
    %v1783 = vadd.f32 %v1781, %v1782
    %v1784 = vmul.f32 %v1783, %v525
    %v1785 = vmul.f32 %v1771, %v1771
    %v1786 = vmul.f32 %v1772, %v1772
    %v1787 = vmul.f32 %v1773, %v1773
    %v1788 = vmul.f32 %v1774, %v1774
    %v1789 = vadd.f32 %v1785, %v1786
    %v1790 = vadd.f32 %v1789, %v1787
    %v1791 = vadd.f32 %v1790, %v1788
    %v1792 = vrot.slane %v1791, 4
    %v1793 = vadd.f32 %v1791, %v1792
    %v1794 = vrot.slane %v1793, 2
    %v1795 = vadd.f32 %v1793, %v1794
    %v1796 = vrot.slane %v1795, 1
    %v1797 = vadd.f32 %v1795, %v1796
    %v1798 = vmul.f32 %v1797, %v525
    %v1799 = vmul.f32 %v1784, %v1784
    %v1800 = vsub.f32 %v1798, %v1799
    %v1801 = vmax.f32 %v1800, 0.0
    %v1802 = vadd.f32 %v1801, 1e-05
    %v1803 = vrsqrt.pop %v1802
    %v1804 = vmul.f32 %v1762, %v1803
    %v1805 = vmul.f32 %v1784, %v1804
    %v1807 = vrot.slane %v1805, 7
    %v1809 = vsub.f32 %v1762, %v1807
    %v1810 = vlaneseq
    %v1811 = vshrl.u32 %v1810, 7
    %v1812 = vsub.s32 1, %v1811
    %v1813 = vrot.slane %v1804, %v1812
    %v1814 = vmul.f32 %v1771, %v1813
    %v1815 = vmul.f32 %v1772, %v1813
    %v1816 = vmul.f32 %v1773, %v1813
    %v1817 = vmul.f32 %v1774, %v1813
    %v1818 = vlaneseq
    %v1819 = vshrl.u32 %v1818, 7
    %v1820 = vsub.s32 2, %v1819
    %v1821 = vrot.slane %v1809, %v1820
    %v1822 = vadd.f32 %v1814, %v1821
    %v1823 = vadd.f32 %v1815, %v1821
    %v1824 = vadd.f32 %v1816, %v1821
    %v1825 = vadd.f32 %v1817, %v1821
    %1826 = vst [vmem:[%s7] sm:$0xff] %v1822
    %1827 = vst [vmem:[%s7 + $0x8] sm:$0xff] %v1823
    %1828 = vst [vmem:[%s7 + $0x10] sm:$0xff] %v1824
    %1829 = vst [vmem:[%s7 + $0x18] sm:$0xff] %v1825
    // Predicated region
    $region42: #{cnn_pallas.1} parent=1 // pred_check
      _
    $region43: #{cnn_pallas.1} parent=1 // pred_check_branch
      %1831 = sbr.rel (0) target = $region45
    $region44: #{cnn_pallas.1} parent=1 // pred_region
      _
    $region45: #{cnn_pallas.1} parent=1 // pred_fallthru
      _
    // Predicated region
    $region46: #{cnn_pallas.1} parent=1 // pred_check
      _
    $region47: #{cnn_pallas.1} parent=1 // pred_check_branch
      %1833 = sbr.rel (0) target = $region49
    $region48: #{cnn_pallas.1} parent=1 // pred_region
      _
    $region49: #{cnn_pallas.1} parent=1 // pred_fallthru
      _
    %1834 = vsyncpa [#allocation3], 1
    %1835 = vsyncpa [#allocation5], 1

</llo_original>
